<compile_context>
chip_gen: v5e
topology: v5e:2x2
jax: 0.10.0
libtpu: 0.0.40
codegen_flags: <defaults>
</compile_context>

<pallas_src>
import functools

import jax
import jax.numpy as jnp
from jax.experimental import pallas as pl
from jax.experimental.pallas import tpu as pltpu


def _round_up(x, m):
    return ((x + m - 1) // m) * m


def _default_exp_dtype():
    """bf16 exp on chips with a bf16 EUP (v6e/v7x), f32 on v5e and older."""
    try:
        kind = jax.devices()[0].device_kind.lower()
    except Exception:
        return jnp.float32
    for old in ("v2", "v3", "v4", "v5"):
        if old in kind:
            return jnp.float32
    return jnp.bfloat16


def _vmem_capacity_bytes():
    try:
        return int(pltpu.get_tpu_info().vmem_capacity_bytes)
    except Exception:
        return 64 * 2**20   # v7x per-TensorCore capacity (safe lower bound)


def _estimate_vmem_bytes(block_n, block_l, dq, dkv, dlat, h):
    """Rough per-grid-step VMEM footprint (pipeline buffers + scratch + live working set)."""
    ch = dlat // h
    f32, bf16 = 4, 2
    dbl = 2                                                    # double-buffered pipeline buffers
    inputs = dbl * (block_n * dq + block_l * dkv + block_l) * f32
    outputs = dbl * block_n * dlat * f32
    weights = dbl * ((dq + 2 * dkv + dlat) * dlat * bf16 + dlat * f32)
    scratch = (2 * block_n * dlat * bf16                       # q / normalized-output slabs
               + block_l * 2 * dlat * bf16                     # fused K|V tile
               + h * block_n * (2 + ch) * f32)                 # m, l, acc
    working = (3 * block_n * block_l * f32                     # per-head logits + probs (+slack)
               + block_l * 2 * dlat * f32                      # kv projection pre-store
               + block_n * dlat * f32)                         # q projection pre-store
    return inputs + outputs + weights + scratch + working


def _mha_kernel(xq_ref, xkv_ref, bias_ref, wq_ref, wkv_ref, wo_ref, bo_ref,
                out_ref, q_scr, kv_scr, o_scr, m_scr, l_scr, acc_scr,
                *, num_heads, ch, exp_dtype):
    H, C = num_heads, ch
    dlat = H * C
    li = pl.program_id(2)
    nl = pl.num_programs(2)

    # ---- once per (batch, query tile): lane-dense Q projection + online-softmax state init ----
    @pl.when(li == 0)
    def _():
        xq = xq_ref[0].astype(jnp.bfloat16)                                  # (tN, Dq)
        # dp_scale is folded into wq at the wrapper; f32 accumulation on the MXU.
        q_scr[...] = jnp.dot(xq, wq_ref[...],
                             preferred_element_type=jnp.float32).astype(jnp.bfloat16)
        m_scr[...] = jnp.full(m_scr.shape, -jnp.inf, m_scr.dtype)
        l_scr[...] = jnp.zeros(l_scr.shape, l_scr.dtype)
        acc_scr[...] = jnp.zeros(acc_scr.shape, acc_scr.dtype)

    # ---- per key tile: fused lane-dense K/V projection (single full-width MXU matmul) ----
    xkv = xkv_ref[0].astype(jnp.bfloat16)                                    # (tL, Dkv)
    kv_scr[...] = jnp.dot(xkv, wkv_ref[...],
                          preferred_element_type=jnp.float32).astype(jnp.bfloat16)
    bias = bias_ref[0]                                                       # (1, tL) additive pad bias

    # ---- flash-style online softmax, heads split only here via static lane slices ----
    for h in range(H):                                                       # static unroll; H is small
        qh = q_scr[:, h * C:(h + 1) * C]                                     # (tN, C) bf16
        kh = kv_scr[:, h * C:(h + 1) * C]                                    # (tL, C) bf16
        vh = kv_scr[:, dlat + h * C: dlat + (h + 1) * C]                     # (tL, C) bf16

        logits = jax.lax.dot_general(qh, kh, (((1,), (1,)), ((), ())),
                                     preferred_element_type=jnp.float32)    # (tN, tL)
        logits = logits + bias

        m_prev = m_scr[h]                                                    # (tN, 1) f32
        m_new = jnp.maximum(m_prev, jnp.max(logits, axis=-1, keepdims=True))
        alpha = jnp.exp(m_prev - m_new)                                      # correction (f32)
        p = jnp.exp((logits - m_new).astype(exp_dtype))                      # (tN, tL)
        l_scr[h] = alpha * l_scr[h] + jnp.sum(p, axis=-1, keepdims=True, dtype=jnp.float32)
        acc_scr[h] = alpha * acc_scr[h] + jnp.dot(p.astype(jnp.bfloat16), vh,
                                                  preferred_element_type=jnp.float32)
        m_scr[h] = m_new

    # ---- last key tile: normalize, re-assemble lane-dense, one full-depth output projection ----
    @pl.when(li == nl - 1)
    def _():
        for h in range(H):
            # Deferred softmax normalization on the small (tN, C) accumulator; EUP reciprocal.
            # NOTE: approx reciprocal (~2^-12 rel. error); use approx=False if reused for training.
            o_scr[:, h * C:(h + 1) * C] = (
                acc_scr[h] * pl.reciprocal(l_scr[h], approx=True)).astype(jnp.bfloat16)
        out = jnp.dot(o_scr[...], wo_ref[...], preferred_element_type=jnp.float32)
        out_ref[0] = (out + bo_ref[...]).astype(out_ref.dtype)


def multi_head_attention(x_q, x_kv, params, *, num_heads, pad_mask=None,
                         block_n=None, block_l=None, exp_dtype=None):
    """params = (wq (Dq,Dlat), wk (Dkv,Dlat), wv (Dkv,Dlat), wo (Dlat,Dlat), bo (Dlat,)).

    Weights are stored (in, out), i.e. y = x @ W (equivalent to nn.Linear's W.T).
    """
    wq, wk, wv, wo, bo = params
    B, N, Dq = x_q.shape
    Bk, L, Dkv = x_kv.shape
    assert Bk == B
    Dlat = wq.shape[1]
    H = num_heads
    assert Dlat % H == 0
    Ch = Dlat // H
    scale = Ch ** (-0.5)

    if exp_dtype is None:
        exp_dtype = _default_exp_dtype()

    # ---- block sizes (footprint-aware: v7x has 64 MiB VMEM per TensorCore) ----
    if block_n is None:
        block_n = min(N, 512)
    if block_n >= N:
        block_n, n_pad = N, N
    else:
        block_n = max(8, (block_n // 8) * 8)                   # second-to-last dim: multiple of 8
        n_pad = _round_up(N, block_n)

    if block_l is None:
        block_l = min(L, 1024)
        while (block_l > 128
               and _estimate_vmem_bytes(block_n, block_l, Dq, Dkv, Dlat, H) > 20 * 2**20):
            block_l = max(128, ((block_l // 2 + 127) // 128) * 128)
    if block_l >= L:
        block_l, l_pad = L, L
    else:
        block_l = max(128, (block_l // 128) * 128)             # last dim of bias block: mult of 128
        l_pad = _round_up(L, block_l)

    # ---- padding (padded keys are masked via the additive bias; padded query rows sliced off) ----
    if n_pad > N:
        x_q = jnp.pad(x_q, ((0, 0), (0, n_pad - N), (0, 0)))
    if l_pad > L:
        x_kv = jnp.pad(x_kv, ((0, 0), (0, l_pad - L), (0, 0)))

    # Boolean key-padding mask (+ L padding) -> additive bias (0 keep / -1e30 pad), built once.
    if pad_mask is None:
        mask = jnp.zeros((B, L), jnp.bool_)
    else:
        mask = pad_mask.reshape(B, L).astype(jnp.bool_)
    if l_pad > L:
        mask = jnp.pad(mask, ((0, 0), (0, l_pad - L)), constant_values=True)
    bias = jnp.where(mask[:, None, :], jnp.float32(-1e30), jnp.float32(0.0))   # (B, 1, l_pad)

    # ---- weight prep: dp_scale folded into Wq, K/V fused, bf16 operands (f32 accumulation) ----
    wq_s = (wq * scale).astype(jnp.bfloat16)                       # (Dq, Dlat)
    wkv = jnp.concatenate([wk, wv], axis=1).astype(jnp.bfloat16)   # (Dkv, 2*Dlat)
    wo_b = wo.astype(jnp.bfloat16)                                 # (Dlat, Dlat)
    bo_2d = bo.reshape(1, Dlat).astype(jnp.float32)

    grid = (B, n_pad // block_n, l_pad // block_l)

    est = _estimate_vmem_bytes(block_n, block_l, Dq, Dkv, Dlat, H)
    vmem_limit = int(min(_vmem_capacity_bytes(), max(32 * 2**20, 2 * est)))

    kernel = functools.partial(_mha_kernel, num_heads=H, ch=Ch, exp_dtype=exp_dtype)

    out = pl.pallas_call(
        kernel,
        out_shape=jax.ShapeDtypeStruct((B, n_pad, Dlat), jnp.float32),
        grid_spec=pltpu.PrefetchScalarGridSpec(
            num_scalar_prefetch=0,
            grid=grid,
            in_specs=[
                pl.BlockSpec((1, block_n, Dq),  lambda b, ni, li: (b, ni, 0)),
                pl.BlockSpec((1, block_l, Dkv), lambda b, ni, li: (b, li, 0)),
                pl.BlockSpec((1, 1, block_l),   lambda b, ni, li: (b, 0, li)),
                pl.BlockSpec((Dq, Dlat),        lambda b, ni, li: (0, 0)),
                pl.BlockSpec((Dkv, 2 * Dlat),   lambda b, ni, li: (0, 0)),
                pl.BlockSpec((Dlat, Dlat),      lambda b, ni, li: (0, 0)),
                pl.BlockSpec((1, Dlat),         lambda b, ni, li: (0, 0)),
            ],
            out_specs=pl.BlockSpec((1, block_n, Dlat), lambda b, ni, li: (b, ni, 0)),
            scratch_shapes=[
                pltpu.VMEM((block_n, Dlat), jnp.bfloat16),      # scaled Q projection (lane-dense)
                pltpu.VMEM((block_l, 2 * Dlat), jnp.bfloat16),  # fused K|V projection, this L tile
                pltpu.VMEM((block_n, Dlat), jnp.bfloat16),      # normalized attention output
                pltpu.VMEM((H, block_n, 1), jnp.float32),       # running max
                pltpu.VMEM((H, block_n, 1), jnp.float32),       # running denominator
                pltpu.VMEM((H, block_n, Ch), jnp.float32),      # running PV accumulator
            ],
        ),
        compiler_params=pltpu.CompilerParams(
            dimension_semantics=("parallel", "parallel", "arbitrary"),
            vmem_limit_bytes=vmem_limit,
        ),
    )(x_q, x_kv, bias, wq_s, wkv, wo_b, bo_2d)

    return out[:, :N, :] if n_pad > N else out


def _reference_mha(x_q, x_kv, params, *, num_heads, pad_mask=None):
    """Pure-JAX f32 reference mirroring the PyTorch forward."""
    wq, wk, wv, wo, bo = params
    B, N, _ = x_q.shape
    _, L, _ = x_kv.shape
    Dlat = wq.shape[1]
    ch = Dlat // num_heads
    scale = ch ** (-0.5)

    q = x_q @ wq    # (B, N, Dlat)
    k = x_kv @ wk   # (B, L, Dlat)
    v = x_kv @ wv

    def split(x, S):
        return x.reshape(B, S, num_heads, ch).transpose(0, 2, 1, 3)  # (B, H, S, Ch)

    qh, kh, vh = split(q, N), split(k, L), split(v, L)
    attn = jnp.einsum('bhic,bhjc->bhij', qh, kh) * scale
    if pad_mask is not None:
        attn = jnp.where(pad_mask[:, None, None, :], -jnp.finfo(attn.dtype).max, attn)
    attn = jax.nn.softmax(attn, axis=-1)
    o = jnp.einsum('bhij,bhjc->bhic', attn, vh)                      # (B, H, N, Ch)
    o = o.transpose(0, 2, 1, 3).reshape(B, N, Dlat)
    return o @ wo + bo


if __name__ == "__main__":
    # Small shapes consistent with the module's forward signature.
    B, N, L = 2, 8, 16
    num_heads = 4
    num_q_input_channels = 32
    num_kv_input_channels = 16
    num_latent_channels = 32

    key = jax.random.PRNGKey(0)
    k_xq, k_xkv, k_wq, k_wk, k_wv, k_wo, k_bo = jax.random.split(key, 7)

    x_q = jax.random.normal(k_xq, (B, N, num_q_input_channels), jnp.float32)
    x_kv = jax.random.normal(k_xkv, (B, L, num_kv_input_channels), jnp.float32)

    # Deterministic synthetic parameters (stored as (in, out); equivalent to W.T of nn.Linear).
    wq = jax.random.normal(k_wq, (num_q_input_channels, num_latent_channels), jnp.float32) * 0.1
    wk = jax.random.normal(k_wk, (num_kv_input_channels, num_latent_channels), jnp.float32) * 0.1
    wv = jax.random.normal(k_wv, (num_kv_input_channels, num_latent_channels), jnp.float32) * 0.1
    wo = jax.random.normal(k_wo, (num_latent_channels, num_latent_channels), jnp.float32) * 0.1
    bo = jax.random.normal(k_bo, (num_latent_channels,), jnp.float32) * 0.1
    params = (wq, wk, wv, wo, bo)

    # Boolean key padding mask: True marks padding; pad the tail of the second batch element.
    pad_mask = jnp.zeros((B, L), jnp.bool_).at[1, L - 4:].set(True)

    out = multi_head_attention(x_q, x_kv, params, num_heads=num_heads, pad_mask=pad_mask)
    out = jax.block_until_ready(out)

    ref = _reference_mha(x_q, x_kv, params, num_heads=num_heads, pad_mask=pad_mask)
    assert out.shape == (B, N, num_latent_channels)
    # Tolerance reflects bf16 MXU operands / bf16 exp (f32 accumulation) vs the f32 reference.
    assert jnp.allclose(out, ref, rtol=2e-2, atol=2e-2), "Pallas output mismatch vs reference"

    print("KERNEL_OK")
</pallas_src>

<mosaic_0001>
module attributes {stable_mosaic.version = 11 : i64} {
  func.func @_mha_kernel(%arg0: i32, %arg1: i32, %arg2: i32, %arg3: memref<1x8x32xf32, #tpu.memory_space<vmem>>, %arg4: memref<1x16x16xf32, #tpu.memory_space<vmem>>, %arg5: memref<1x1x16xf32, #tpu.memory_space<vmem>>, %arg6: memref<32x32xbf16, #tpu.memory_space<vmem>>, %arg7: memref<16x64xbf16, #tpu.memory_space<vmem>>, %arg8: memref<32x32xbf16, #tpu.memory_space<vmem>>, %arg9: memref<1x32xf32, #tpu.memory_space<vmem>>, %arg10: memref<1x8x32xf32, #tpu.memory_space<vmem>>, %arg11: memref<8x32xbf16, #tpu.memory_space<vmem>>, %arg12: memref<16x64xbf16, #tpu.memory_space<vmem>>, %arg13: memref<8x32xbf16, #tpu.memory_space<vmem>>, %arg14: memref<4x8x1xf32, #tpu.memory_space<vmem>>, %arg15: memref<4x8x1xf32, #tpu.memory_space<vmem>>, %arg16: memref<4x8x8xf32, #tpu.memory_space<vmem>>) attributes {dimension_semantics = [#tpu.dimension_semantics<parallel>, #tpu.dimension_semantics<parallel>, #tpu.dimension_semantics<arbitrary>], iteration_bounds = array<i64: 2, 1, 1>, scalar_prefetch = 0 : i64, scratch_operands = 6 : i64, tpu.core_type = #tpu.core_type<tc>, window_params = [{transform_indices = @transform_0, window_bounds = array<i64: 1, 8, 32>}, {transform_indices = @transform_1, window_bounds = array<i64: 1, 16, 16>}, {transform_indices = @transform_2, window_bounds = array<i64: 1, 1, 16>}, {pipeline_mode = #tpu.pipeline_mode<synchronous>, transform_indices = @transform_3, window_bounds = array<i64: 32, 32>}, {pipeline_mode = #tpu.pipeline_mode<synchronous>, transform_indices = @transform_4, window_bounds = array<i64: 16, 64>}, {pipeline_mode = #tpu.pipeline_mode<synchronous>, transform_indices = @transform_5, window_bounds = array<i64: 32, 32>}, {pipeline_mode = #tpu.pipeline_mode<synchronous>, transform_indices = @transform_6, window_bounds = array<i64: 1, 32>}, {transform_indices = @transform_7, window_bounds = array<i64: 1, 8, 32>}]} {
    %c0_i32 = arith.constant 0 : i32
    %0 = arith.cmpi eq, %arg2, %c0_i32 : i32
    %1 = arith.extui %0 : i1 to i32
    %c0_i32_0 = arith.constant 0 : i32
    %2 = arith.cmpi ne, %1, %c0_i32_0 : i32
    scf.if %2 {
      %c0_114 = arith.constant 0 : index
      %c0_115 = arith.constant 0 : index
      %c0_116 = arith.constant 0 : index
      %171 = vector.load %arg3[%c0_114, %c0_115, %c0_116] : memref<1x8x32xf32, #tpu.memory_space<vmem>>, vector<1x8x32xf32>
      %172 = vector.shape_cast %171 : vector<1x8x32xf32> to vector<8x32xf32>
      %173 = arith.truncf %172 : vector<8x32xf32> to vector<8x32xbf16>
      %c0_117 = arith.constant 0 : index
      %c0_118 = arith.constant 0 : index
      %174 = vector.load %arg6[%c0_117, %c0_118] : memref<32x32xbf16, #tpu.memory_space<vmem>>, vector<32x32xbf16>
      %cst_119 = arith.constant dense<0.000000e+00> : vector<8x32xf32>
      %175 = tpu.matmul %173, %174, %cst_119 {dimension_numbers = #tpu.dot_dimension_numbers<[1], [0], [0], [1], [0, 0, 1, 1], [], []>} : vector<8x32xbf16>, vector<32x32xbf16>, vector<8x32xf32> -> vector<8x32xf32>
      %176 = arith.truncf %175 : vector<8x32xf32> to vector<8x32xbf16>
      %c0_120 = arith.constant 0 : index
      %c0_121 = arith.constant 0 : index
      %177 = vector.load %arg11[%c0_120, %c0_121] : memref<8x32xbf16, #tpu.memory_space<vmem>>, vector<8x32xbf16>
      tpu.vector_store %arg11[%c0_120, %c0_121], %176 {strides = array<i32>} : memref<8x32xbf16, #tpu.memory_space<vmem>>, vector<8x32xbf16>,
      %cst_122 = arith.constant 0xFF800000 : f32
      %178 = vector.broadcast %cst_122 : f32 to vector<4x8x1xf32>
      %c0_123 = arith.constant 0 : index
      %c0_124 = arith.constant 0 : index
      %c0_125 = arith.constant 0 : index
      %179 = vector.load %arg14[%c0_123, %c0_124, %c0_125] : memref<4x8x1xf32, #tpu.memory_space<vmem>>, vector<4x8x1xf32>
      tpu.vector_store %arg14[%c0_123, %c0_124, %c0_125], %178 {strides = array<i32>} : memref<4x8x1xf32, #tpu.memory_space<vmem>>, vector<4x8x1xf32>,
      %cst_126 = arith.constant 0.000000e+00 : f32
      %180 = vector.broadcast %cst_126 : f32 to vector<4x8x1xf32>
      %c0_127 = arith.constant 0 : index
      %c0_128 = arith.constant 0 : index
      %c0_129 = arith.constant 0 : index
      %181 = vector.load %arg15[%c0_127, %c0_128, %c0_129] : memref<4x8x1xf32, #tpu.memory_space<vmem>>, vector<4x8x1xf32>
      tpu.vector_store %arg15[%c0_127, %c0_128, %c0_129], %180 {strides = array<i32>} : memref<4x8x1xf32, #tpu.memory_space<vmem>>, vector<4x8x1xf32>,
      %cst_130 = arith.constant 0.000000e+00 : f32
      %182 = vector.broadcast %cst_130 : f32 to vector<4x8x8xf32>
      %c0_131 = arith.constant 0 : index
      %c0_132 = arith.constant 0 : index
      %c0_133 = arith.constant 0 : index
      %183 = vector.load %arg16[%c0_131, %c0_132, %c0_133] : memref<4x8x8xf32, #tpu.memory_space<vmem>>, vector<4x8x8xf32>
      tpu.vector_store %arg16[%c0_131, %c0_132, %c0_133], %182 {strides = array<i32>} : memref<4x8x8xf32, #tpu.memory_space<vmem>>, vector<4x8x8xf32>,
    } else {
    }
    %c0 = arith.constant 0 : index
    %c0_1 = arith.constant 0 : index
    %c0_2 = arith.constant 0 : index
    %3 = vector.load %arg4[%c0, %c0_1, %c0_2] : memref<1x16x16xf32, #tpu.memory_space<vmem>>, vector<1x16x16xf32>
    %4 = vector.shape_cast %3 : vector<1x16x16xf32> to vector<16x16xf32>
    %5 = arith.truncf %4 : vector<16x16xf32> to vector<16x16xbf16>
    %c0_3 = arith.constant 0 : index
    %c0_4 = arith.constant 0 : index
    %6 = vector.load %arg7[%c0_3, %c0_4] : memref<16x64xbf16, #tpu.memory_space<vmem>>, vector<16x64xbf16>
    %cst = arith.constant dense<0.000000e+00> : vector<16x64xf32>
    %7 = tpu.matmul %5, %6, %cst {dimension_numbers = #tpu.dot_dimension_numbers<[1], [0], [0], [1], [0, 0, 1, 1], [], []>} : vector<16x16xbf16>, vector<16x64xbf16>, vector<16x64xf32> -> vector<16x64xf32>
    %8 = arith.truncf %7 : vector<16x64xf32> to vector<16x64xbf16>
    %c0_5 = arith.constant 0 : index
    %c0_6 = arith.constant 0 : index
    %9 = vector.load %arg12[%c0_5, %c0_6] : memref<16x64xbf16, #tpu.memory_space<vmem>>, vector<16x64xbf16>
    tpu.vector_store %arg12[%c0_5, %c0_6], %8 {strides = array<i32>} : memref<16x64xbf16, #tpu.memory_space<vmem>>, vector<16x64xbf16>,
    %c0_7 = arith.constant 0 : index
    %c0_8 = arith.constant 0 : index
    %c0_9 = arith.constant 0 : index
    %10 = vector.load %arg5[%c0_7, %c0_8, %c0_9] : memref<1x1x16xf32, #tpu.memory_space<vmem>>, vector<1x1x16xf32>
    %11 = vector.shape_cast %10 : vector<1x1x16xf32> to vector<1x16xf32>
    %c0_10 = arith.constant 0 : index
    %c0_11 = arith.constant 0 : index
    %12 = vector.load %arg11[%c0_10, %c0_11] : memref<8x32xbf16, #tpu.memory_space<vmem>>, vector<8x8xbf16>
    %c0_12 = arith.constant 0 : index
    %c0_13 = arith.constant 0 : index
    %13 = vector.load %arg12[%c0_12, %c0_13] : memref<16x64xbf16, #tpu.memory_space<vmem>>, vector<16x8xbf16>
    %c0_14 = arith.constant 0 : index
    %c32 = arith.constant 32 : index
    %14 = vector.load %arg12[%c0_14, %c32] : memref<16x64xbf16, #tpu.memory_space<vmem>>, vector<16x8xbf16>
    %cst_15 = arith.constant dense<0.000000e+00> : vector<8x16xf32>
    %15 = tpu.matmul %12, %13, %cst_15 {dimension_numbers = #tpu.dot_dimension_numbers<[1], [1], [0], [0], [0, 0, 1, 0], [], []>} : vector<8x8xbf16>, vector<16x8xbf16>, vector<8x16xf32> -> vector<8x16xf32>
    %16 = vector.broadcast %11 : vector<1x16xf32> to vector<8x16xf32>
    %17 = arith.addf %15, %16 : vector<8x16xf32>
    %c0_16 = arith.constant 0 : index
    %c0_17 = arith.constant 0 : index
    %c0_18 = arith.constant 0 : index
    %18 = vector.load %arg14[%c0_16, %c0_17, %c0_18] : memref<4x8x1xf32, #tpu.memory_space<vmem>>, vector<1x8x1xf32>
    %19 = vector.shape_cast %18 : vector<1x8x1xf32> to vector<8x1xf32>
    %cst_19 = arith.constant dense<0xFF800000> : vector<8xf32>
    %20 = vector.multi_reduction <maximumf>, %17, %cst_19 [1] : vector<8x16xf32> to vector<8xf32>
    %21 = vector.shape_cast %20 : vector<8xf32> to vector<8x1xf32>
    %22 = arith.maximumf %19, %21 : vector<8x1xf32>
    %23 = arith.subf %19, %22 : vector<8x1xf32>
    %24 = math.exp %23 : vector<8x1xf32>
    %25 = vector.broadcast %22 : vector<8x1xf32> to vector<8x16xf32>
    %26 = arith.subf %17, %25 : vector<8x16xf32>
    %27 = arith.truncf %26 : vector<8x16xf32> to vector<8x16xbf16>
    %28 = math.exp %27 : vector<8x16xbf16>
    %c0_20 = arith.constant 0 : index
    %c0_21 = arith.constant 0 : index
    %c0_22 = arith.constant 0 : index
    %29 = vector.load %arg15[%c0_20, %c0_21, %c0_22] : memref<4x8x1xf32, #tpu.memory_space<vmem>>, vector<1x8x1xf32>
    %30 = vector.shape_cast %29 : vector<1x8x1xf32> to vector<8x1xf32>
    %31 = arith.mulf %24, %30 : vector<8x1xf32>
    %32 = arith.extf %28 : vector<8x16xbf16> to vector<8x16xf32>
    %cst_23 = arith.constant dense<0.000000e+00> : vector<8xf32>
    %33 = vector.multi_reduction <add>, %32, %cst_23 [1] : vector<8x16xf32> to vector<8xf32>
    %34 = vector.shape_cast %33 : vector<8xf32> to vector<8x1xf32>
    %35 = arith.addf %31, %34 : vector<8x1xf32>
    %c0_24 = arith.constant 0 : index
    %c0_25 = arith.constant 0 : index
    %c0_26 = arith.constant 0 : index
    %36 = vector.load %arg15[%c0_24, %c0_25, %c0_26] : memref<4x8x1xf32, #tpu.memory_space<vmem>>, vector<1x8x1xf32>
    %37 = vector.shape_cast %36 : vector<1x8x1xf32> to vector<8x1xf32>
    %38 = vector.shape_cast %35 : vector<8x1xf32> to vector<1x8x1xf32>
    tpu.vector_store %arg15[%c0_24, %c0_25, %c0_26], %38 {strides = array<i32>} : memref<4x8x1xf32, #tpu.memory_space<vmem>>, vector<1x8x1xf32>,
    %c0_27 = arith.constant 0 : index
    %c0_28 = arith.constant 0 : index
    %c0_29 = arith.constant 0 : index
    %39 = vector.load %arg16[%c0_27, %c0_28, %c0_29] : memref<4x8x8xf32, #tpu.memory_space<vmem>>, vector<1x8x8xf32>
    %40 = vector.shape_cast %39 : vector<1x8x8xf32> to vector<8x8xf32>
    %41 = vector.broadcast %24 : vector<8x1xf32> to vector<8x8xf32>
    %42 = arith.mulf %41, %40 : vector<8x8xf32>
    %cst_30 = arith.constant dense<0.000000e+00> : vector<8x8xf32>
    %43 = tpu.matmul %28, %14, %cst_30 {dimension_numbers = #tpu.dot_dimension_numbers<[1], [0], [0], [1], [0, 0, 1, 1], [], []>} : vector<8x16xbf16>, vector<16x8xbf16>, vector<8x8xf32> -> vector<8x8xf32>
    %44 = arith.addf %42, %43 : vector<8x8xf32>
    %c0_31 = arith.constant 0 : index
    %c0_32 = arith.constant 0 : index
    %c0_33 = arith.constant 0 : index
    %45 = vector.load %arg16[%c0_31, %c0_32, %c0_33] : memref<4x8x8xf32, #tpu.memory_space<vmem>>, vector<1x8x8xf32>
    %46 = vector.shape_cast %45 : vector<1x8x8xf32> to vector<8x8xf32>
    %47 = vector.shape_cast %44 : vector<8x8xf32> to vector<1x8x8xf32>
    tpu.vector_store %arg16[%c0_31, %c0_32, %c0_33], %47 {strides = array<i32>} : memref<4x8x8xf32, #tpu.memory_space<vmem>>, vector<1x8x8xf32>,
    %c0_34 = arith.constant 0 : index
    %c0_35 = arith.constant 0 : index
    %c0_36 = arith.constant 0 : index
    %48 = vector.load %arg14[%c0_34, %c0_35, %c0_36] : memref<4x8x1xf32, #tpu.memory_space<vmem>>, vector<1x8x1xf32>
    %49 = vector.shape_cast %48 : vector<1x8x1xf32> to vector<8x1xf32>
    %50 = vector.shape_cast %22 : vector<8x1xf32> to vector<1x8x1xf32>
    tpu.vector_store %arg14[%c0_34, %c0_35, %c0_36], %50 {strides = array<i32>} : memref<4x8x1xf32, #tpu.memory_space<vmem>>, vector<1x8x1xf32>,
    %c0_37 = arith.constant 0 : index
    %c8 = arith.constant 8 : index
    %51 = vector.load %arg11[%c0_37, %c8] : memref<8x32xbf16, #tpu.memory_space<vmem>>, vector<8x8xbf16>
    %c0_38 = arith.constant 0 : index
    %c8_39 = arith.constant 8 : index
    %52 = vector.load %arg12[%c0_38, %c8_39] : memref<16x64xbf16, #tpu.memory_space<vmem>>, vector<16x8xbf16>
    %c0_40 = arith.constant 0 : index
    %c40 = arith.constant 40 : index
    %53 = vector.load %arg12[%c0_40, %c40] : memref<16x64xbf16, #tpu.memory_space<vmem>>, vector<16x8xbf16>
    %cst_41 = arith.constant dense<0.000000e+00> : vector<8x16xf32>
    %54 = tpu.matmul %51, %52, %cst_41 {dimension_numbers = #tpu.dot_dimension_numbers<[1], [1], [0], [0], [0, 0, 1, 0], [], []>} : vector<8x8xbf16>, vector<16x8xbf16>, vector<8x16xf32> -> vector<8x16xf32>
    %55 = vector.broadcast %11 : vector<1x16xf32> to vector<8x16xf32>
    %56 = arith.addf %54, %55 : vector<8x16xf32>
    %c1 = arith.constant 1 : index
    %c0_42 = arith.constant 0 : index
    %c0_43 = arith.constant 0 : index
    %57 = vector.load %arg14[%c1, %c0_42, %c0_43] : memref<4x8x1xf32, #tpu.memory_space<vmem>>, vector<1x8x1xf32>
    %58 = vector.shape_cast %57 : vector<1x8x1xf32> to vector<8x1xf32>
    %cst_44 = arith.constant dense<0xFF800000> : vector<8xf32>
    %59 = vector.multi_reduction <maximumf>, %56, %cst_44 [1] : vector<8x16xf32> to vector<8xf32>
    %60 = vector.shape_cast %59 : vector<8xf32> to vector<8x1xf32>
    %61 = arith.maximumf %58, %60 : vector<8x1xf32>
    %62 = arith.subf %58, %61 : vector<8x1xf32>
    %63 = math.exp %62 : vector<8x1xf32>
    %64 = vector.broadcast %61 : vector<8x1xf32> to vector<8x16xf32>
    %65 = arith.subf %56, %64 : vector<8x16xf32>
    %66 = arith.truncf %65 : vector<8x16xf32> to vector<8x16xbf16>
    %67 = math.exp %66 : vector<8x16xbf16>
    %c1_45 = arith.constant 1 : index
    %c0_46 = arith.constant 0 : index
    %c0_47 = arith.constant 0 : index
    %68 = vector.load %arg15[%c1_45, %c0_46, %c0_47] : memref<4x8x1xf32, #tpu.memory_space<vmem>>, vector<1x8x1xf32>
    %69 = vector.shape_cast %68 : vector<1x8x1xf32> to vector<8x1xf32>
    %70 = arith.mulf %63, %69 : vector<8x1xf32>
    %71 = arith.extf %67 : vector<8x16xbf16> to vector<8x16xf32>
    %cst_48 = arith.constant dense<0.000000e+00> : vector<8xf32>
    %72 = vector.multi_reduction <add>, %71, %cst_48 [1] : vector<8x16xf32> to vector<8xf32>
    %73 = vector.shape_cast %72 : vector<8xf32> to vector<8x1xf32>
    %74 = arith.addf %70, %73 : vector<8x1xf32>
    %c1_49 = arith.constant 1 : index
    %c0_50 = arith.constant 0 : index
    %c0_51 = arith.constant 0 : index
    %75 = vector.load %arg15[%c1_49, %c0_50, %c0_51] : memref<4x8x1xf32, #tpu.memory_space<vmem>>, vector<1x8x1xf32>
    %76 = vector.shape_cast %75 : vector<1x8x1xf32> to vector<8x1xf32>
    %77 = vector.shape_cast %74 : vector<8x1xf32> to vector<1x8x1xf32>
    tpu.vector_store %arg15[%c1_49, %c0_50, %c0_51], %77 {strides = array<i32>} : memref<4x8x1xf32, #tpu.memory_space<vmem>>, vector<1x8x1xf32>,
    %c1_52 = arith.constant 1 : index
    %c0_53 = arith.constant 0 : index
    %c0_54 = arith.constant 0 : index
    %78 = vector.load %arg16[%c1_52, %c0_53, %c0_54] : memref<4x8x8xf32, #tpu.memory_space<vmem>>, vector<1x8x8xf32>
    %79 = vector.shape_cast %78 : vector<1x8x8xf32> to vector<8x8xf32>
    %80 = vector.broadcast %63 : vector<8x1xf32> to vector<8x8xf32>
    %81 = arith.mulf %80, %79 : vector<8x8xf32>
    %cst_55 = arith.constant dense<0.000000e+00> : vector<8x8xf32>
    %82 = tpu.matmul %67, %53, %cst_55 {dimension_numbers = #tpu.dot_dimension_numbers<[1], [0], [0], [1], [0, 0, 1, 1], [], []>} : vector<8x16xbf16>, vector<16x8xbf16>, vector<8x8xf32> -> vector<8x8xf32>
    %83 = arith.addf %81, %82 : vector<8x8xf32>
    %c1_56 = arith.constant 1 : index
    %c0_57 = arith.constant 0 : index
    %c0_58 = arith.constant 0 : index
    %84 = vector.load %arg16[%c1_56, %c0_57, %c0_58] : memref<4x8x8xf32, #tpu.memory_space<vmem>>, vector<1x8x8xf32>
    %85 = vector.shape_cast %84 : vector<1x8x8xf32> to vector<8x8xf32>
    %86 = vector.shape_cast %83 : vector<8x8xf32> to vector<1x8x8xf32>
    tpu.vector_store %arg16[%c1_56, %c0_57, %c0_58], %86 {strides = array<i32>} : memref<4x8x8xf32, #tpu.memory_space<vmem>>, vector<1x8x8xf32>,
    %c1_59 = arith.constant 1 : index
    %c0_60 = arith.constant 0 : index
    %c0_61 = arith.constant 0 : index
    %87 = vector.load %arg14[%c1_59, %c0_60, %c0_61] : memref<4x8x1xf32, #tpu.memory_space<vmem>>, vector<1x8x1xf32>
    %88 = vector.shape_cast %87 : vector<1x8x1xf32> to vector<8x1xf32>
    %89 = vector.shape_cast %61 : vector<8x1xf32> to vector<1x8x1xf32>
    tpu.vector_store %arg14[%c1_59, %c0_60, %c0_61], %89 {strides = array<i32>} : memref<4x8x1xf32, #tpu.memory_space<vmem>>, vector<1x8x1xf32>,
    %c0_62 = arith.constant 0 : index
    %c16 = arith.constant 16 : index
    %90 = vector.load %arg11[%c0_62, %c16] : memref<8x32xbf16, #tpu.memory_space<vmem>>, vector<8x8xbf16>
    %c0_63 = arith.constant 0 : index
    %c16_64 = arith.constant 16 : index
    %91 = vector.load %arg12[%c0_63, %c16_64] : memref<16x64xbf16, #tpu.memory_space<vmem>>, vector<16x8xbf16>
    %c0_65 = arith.constant 0 : index
    %c48 = arith.constant 48 : index
    %92 = vector.load %arg12[%c0_65, %c48] : memref<16x64xbf16, #tpu.memory_space<vmem>>, vector<16x8xbf16>
    %cst_66 = arith.constant dense<0.000000e+00> : vector<8x16xf32>
    %93 = tpu.matmul %90, %91, %cst_66 {dimension_numbers = #tpu.dot_dimension_numbers<[1], [1], [0], [0], [0, 0, 1, 0], [], []>} : vector<8x8xbf16>, vector<16x8xbf16>, vector<8x16xf32> -> vector<8x16xf32>
    %94 = vector.broadcast %11 : vector<1x16xf32> to vector<8x16xf32>
    %95 = arith.addf %93, %94 : vector<8x16xf32>
    %c2 = arith.constant 2 : index
    %c0_67 = arith.constant 0 : index
    %c0_68 = arith.constant 0 : index
    %96 = vector.load %arg14[%c2, %c0_67, %c0_68] : memref<4x8x1xf32, #tpu.memory_space<vmem>>, vector<1x8x1xf32>
    %97 = vector.shape_cast %96 : vector<1x8x1xf32> to vector<8x1xf32>
    %cst_69 = arith.constant dense<0xFF800000> : vector<8xf32>
    %98 = vector.multi_reduction <maximumf>, %95, %cst_69 [1] : vector<8x16xf32> to vector<8xf32>
    %99 = vector.shape_cast %98 : vector<8xf32> to vector<8x1xf32>
    %100 = arith.maximumf %97, %99 : vector<8x1xf32>
    %101 = arith.subf %97, %100 : vector<8x1xf32>
    %102 = math.exp %101 : vector<8x1xf32>
    %103 = vector.broadcast %100 : vector<8x1xf32> to vector<8x16xf32>
    %104 = arith.subf %95, %103 : vector<8x16xf32>
    %105 = arith.truncf %104 : vector<8x16xf32> to vector<8x16xbf16>
    %106 = math.exp %105 : vector<8x16xbf16>
    %c2_70 = arith.constant 2 : index
    %c0_71 = arith.constant 0 : index
    %c0_72 = arith.constant 0 : index
    %107 = vector.load %arg15[%c2_70, %c0_71, %c0_72] : memref<4x8x1xf32, #tpu.memory_space<vmem>>, vector<1x8x1xf32>
    %108 = vector.shape_cast %107 : vector<1x8x1xf32> to vector<8x1xf32>
    %109 = arith.mulf %102, %108 : vector<8x1xf32>
    %110 = arith.extf %106 : vector<8x16xbf16> to vector<8x16xf32>
    %cst_73 = arith.constant dense<0.000000e+00> : vector<8xf32>
    %111 = vector.multi_reduction <add>, %110, %cst_73 [1] : vector<8x16xf32> to vector<8xf32>
    %112 = vector.shape_cast %111 : vector<8xf32> to vector<8x1xf32>
    %113 = arith.addf %109, %112 : vector<8x1xf32>
    %c2_74 = arith.constant 2 : index
    %c0_75 = arith.constant 0 : index
    %c0_76 = arith.constant 0 : index
    %114 = vector.load %arg15[%c2_74, %c0_75, %c0_76] : memref<4x8x1xf32, #tpu.memory_space<vmem>>, vector<1x8x1xf32>
    %115 = vector.shape_cast %114 : vector<1x8x1xf32> to vector<8x1xf32>
    %116 = vector.shape_cast %113 : vector<8x1xf32> to vector<1x8x1xf32>
    tpu.vector_store %arg15[%c2_74, %c0_75, %c0_76], %116 {strides = array<i32>} : memref<4x8x1xf32, #tpu.memory_space<vmem>>, vector<1x8x1xf32>,
    %c2_77 = arith.constant 2 : index
    %c0_78 = arith.constant 0 : index
    %c0_79 = arith.constant 0 : index
    %117 = vector.load %arg16[%c2_77, %c0_78, %c0_79] : memref<4x8x8xf32, #tpu.memory_space<vmem>>, vector<1x8x8xf32>
    %118 = vector.shape_cast %117 : vector<1x8x8xf32> to vector<8x8xf32>
    %119 = vector.broadcast %102 : vector<8x1xf32> to vector<8x8xf32>
    %120 = arith.mulf %119, %118 : vector<8x8xf32>
    %cst_80 = arith.constant dense<0.000000e+00> : vector<8x8xf32>
    %121 = tpu.matmul %106, %92, %cst_80 {dimension_numbers = #tpu.dot_dimension_numbers<[1], [0], [0], [1], [0, 0, 1, 1], [], []>} : vector<8x16xbf16>, vector<16x8xbf16>, vector<8x8xf32> -> vector<8x8xf32>
    %122 = arith.addf %120, %121 : vector<8x8xf32>
    %c2_81 = arith.constant 2 : index
    %c0_82 = arith.constant 0 : index
    %c0_83 = arith.constant 0 : index
    %123 = vector.load %arg16[%c2_81, %c0_82, %c0_83] : memref<4x8x8xf32, #tpu.memory_space<vmem>>, vector<1x8x8xf32>
    %124 = vector.shape_cast %123 : vector<1x8x8xf32> to vector<8x8xf32>
    %125 = vector.shape_cast %122 : vector<8x8xf32> to vector<1x8x8xf32>
    tpu.vector_store %arg16[%c2_81, %c0_82, %c0_83], %125 {strides = array<i32>} : memref<4x8x8xf32, #tpu.memory_space<vmem>>, vector<1x8x8xf32>,
    %c2_84 = arith.constant 2 : index
    %c0_85 = arith.constant 0 : index
    %c0_86 = arith.constant 0 : index
    %126 = vector.load %arg14[%c2_84, %c0_85, %c0_86] : memref<4x8x1xf32, #tpu.memory_space<vmem>>, vector<1x8x1xf32>
    %127 = vector.shape_cast %126 : vector<1x8x1xf32> to vector<8x1xf32>
    %128 = vector.shape_cast %100 : vector<8x1xf32> to vector<1x8x1xf32>
    tpu.vector_store %arg14[%c2_84, %c0_85, %c0_86], %128 {strides = array<i32>} : memref<4x8x1xf32, #tpu.memory_space<vmem>>, vector<1x8x1xf32>,
    %c0_87 = arith.constant 0 : index
    %c24 = arith.constant 24 : index
    %129 = vector.load %arg11[%c0_87, %c24] : memref<8x32xbf16, #tpu.memory_space<vmem>>, vector<8x8xbf16>
    %c0_88 = arith.constant 0 : index
    %c24_89 = arith.constant 24 : index
    %130 = vector.load %arg12[%c0_88, %c24_89] : memref<16x64xbf16, #tpu.memory_space<vmem>>, vector<16x8xbf16>
    %c0_90 = arith.constant 0 : index
    %c56 = arith.constant 56 : index
    %131 = vector.load %arg12[%c0_90, %c56] : memref<16x64xbf16, #tpu.memory_space<vmem>>, vector<16x8xbf16>
    %cst_91 = arith.constant dense<0.000000e+00> : vector<8x16xf32>
    %132 = tpu.matmul %129, %130, %cst_91 {dimension_numbers = #tpu.dot_dimension_numbers<[1], [1], [0], [0], [0, 0, 1, 0], [], []>} : vector<8x8xbf16>, vector<16x8xbf16>, vector<8x16xf32> -> vector<8x16xf32>
    %133 = vector.broadcast %11 : vector<1x16xf32> to vector<8x16xf32>
    %134 = arith.addf %132, %133 : vector<8x16xf32>
    %c3 = arith.constant 3 : index
    %c0_92 = arith.constant 0 : index
    %c0_93 = arith.constant 0 : index
    %135 = vector.load %arg14[%c3, %c0_92, %c0_93] : memref<4x8x1xf32, #tpu.memory_space<vmem>>, vector<1x8x1xf32>
    %136 = vector.shape_cast %135 : vector<1x8x1xf32> to vector<8x1xf32>
    %cst_94 = arith.constant dense<0xFF800000> : vector<8xf32>
    %137 = vector.multi_reduction <maximumf>, %134, %cst_94 [1] : vector<8x16xf32> to vector<8xf32>
    %138 = vector.shape_cast %137 : vector<8xf32> to vector<8x1xf32>
    %139 = arith.maximumf %136, %138 : vector<8x1xf32>
    %140 = arith.subf %136, %139 : vector<8x1xf32>
    %141 = math.exp %140 : vector<8x1xf32>
    %142 = vector.broadcast %139 : vector<8x1xf32> to vector<8x16xf32>
    %143 = arith.subf %134, %142 : vector<8x16xf32>
    %144 = arith.truncf %143 : vector<8x16xf32> to vector<8x16xbf16>
    %145 = math.exp %144 : vector<8x16xbf16>
    %c3_95 = arith.constant 3 : index
    %c0_96 = arith.constant 0 : index
    %c0_97 = arith.constant 0 : index
    %146 = vector.load %arg15[%c3_95, %c0_96, %c0_97] : memref<4x8x1xf32, #tpu.memory_space<vmem>>, vector<1x8x1xf32>
    %147 = vector.shape_cast %146 : vector<1x8x1xf32> to vector<8x1xf32>
    %148 = arith.mulf %141, %147 : vector<8x1xf32>
    %149 = arith.extf %145 : vector<8x16xbf16> to vector<8x16xf32>
    %cst_98 = arith.constant dense<0.000000e+00> : vector<8xf32>
    %150 = vector.multi_reduction <add>, %149, %cst_98 [1] : vector<8x16xf32> to vector<8xf32>
    %151 = vector.shape_cast %150 : vector<8xf32> to vector<8x1xf32>
    %152 = arith.addf %148, %151 : vector<8x1xf32>
    %c3_99 = arith.constant 3 : index
    %c0_100 = arith.constant 0 : index
    %c0_101 = arith.constant 0 : index
    %153 = vector.load %arg15[%c3_99, %c0_100, %c0_101] : memref<4x8x1xf32, #tpu.memory_space<vmem>>, vector<1x8x1xf32>
    %154 = vector.shape_cast %153 : vector<1x8x1xf32> to vector<8x1xf32>
    %155 = vector.shape_cast %152 : vector<8x1xf32> to vector<1x8x1xf32>
    tpu.vector_store %arg15[%c3_99, %c0_100, %c0_101], %155 {strides = array<i32>} : memref<4x8x1xf32, #tpu.memory_space<vmem>>, vector<1x8x1xf32>,
    %c3_102 = arith.constant 3 : index
    %c0_103 = arith.constant 0 : index
    %c0_104 = arith.constant 0 : index
    %156 = vector.load %arg16[%c3_102, %c0_103, %c0_104] : memref<4x8x8xf32, #tpu.memory_space<vmem>>, vector<1x8x8xf32>
    %157 = vector.shape_cast %156 : vector<1x8x8xf32> to vector<8x8xf32>
    %158 = vector.broadcast %141 : vector<8x1xf32> to vector<8x8xf32>
    %159 = arith.mulf %158, %157 : vector<8x8xf32>
    %cst_105 = arith.constant dense<0.000000e+00> : vector<8x8xf32>
    %160 = tpu.matmul %145, %131, %cst_105 {dimension_numbers = #tpu.dot_dimension_numbers<[1], [0], [0], [1], [0, 0, 1, 1], [], []>} : vector<8x16xbf16>, vector<16x8xbf16>, vector<8x8xf32> -> vector<8x8xf32>
    %161 = arith.addf %159, %160 : vector<8x8xf32>
    %c3_106 = arith.constant 3 : index
    %c0_107 = arith.constant 0 : index
    %c0_108 = arith.constant 0 : index
    %162 = vector.load %arg16[%c3_106, %c0_107, %c0_108] : memref<4x8x8xf32, #tpu.memory_space<vmem>>, vector<1x8x8xf32>
    %163 = vector.shape_cast %162 : vector<1x8x8xf32> to vector<8x8xf32>
    %164 = vector.shape_cast %161 : vector<8x8xf32> to vector<1x8x8xf32>
    tpu.vector_store %arg16[%c3_106, %c0_107, %c0_108], %164 {strides = array<i32>} : memref<4x8x8xf32, #tpu.memory_space<vmem>>, vector<1x8x8xf32>,
    %c3_109 = arith.constant 3 : index
    %c0_110 = arith.constant 0 : index
    %c0_111 = arith.constant 0 : index
    %165 = vector.load %arg14[%c3_109, %c0_110, %c0_111] : memref<4x8x1xf32, #tpu.memory_space<vmem>>, vector<1x8x1xf32>
    %166 = vector.shape_cast %165 : vector<1x8x1xf32> to vector<8x1xf32>
    %167 = vector.shape_cast %139 : vector<8x1xf32> to vector<1x8x1xf32>
    tpu.vector_store %arg14[%c3_109, %c0_110, %c0_111], %167 {strides = array<i32>} : memref<4x8x1xf32, #tpu.memory_space<vmem>>, vector<1x8x1xf32>,
    %c0_i32_112 = arith.constant 0 : i32
    %168 = arith.cmpi eq, %arg2, %c0_i32_112 : i32
    %169 = arith.extui %168 : i1 to i32
    %c0_i32_113 = arith.constant 0 : i32
    %170 = arith.cmpi ne, %169, %c0_i32_113 : i32
    scf.if %170 {
      %c0_114 = arith.constant 0 : index
      %c0_115 = arith.constant 0 : index
      %c0_116 = arith.constant 0 : index
      %171 = vector.load %arg16[%c0_114, %c0_115, %c0_116] : memref<4x8x8xf32, #tpu.memory_space<vmem>>, vector<1x8x8xf32>
      %172 = vector.shape_cast %171 : vector<1x8x8xf32> to vector<8x8xf32>
      %c0_117 = arith.constant 0 : index
      %c0_118 = arith.constant 0 : index
      %c0_119 = arith.constant 0 : index
      %173 = vector.load %arg15[%c0_117, %c0_118, %c0_119] : memref<4x8x1xf32, #tpu.memory_space<vmem>>, vector<1x8x1xf32>
      %174 = vector.shape_cast %173 : vector<1x8x1xf32> to vector<8x1xf32>
      %175 = tpu.reciprocal %174 {approx = true} : vector<8x1xf32> -> vector<8x1xf32>
      %176 = vector.broadcast %175 : vector<8x1xf32> to vector<8x8xf32>
      %177 = arith.mulf %172, %176 : vector<8x8xf32>
      %178 = arith.truncf %177 : vector<8x8xf32> to vector<8x8xbf16>
      %c0_120 = arith.constant 0 : index
      %c0_121 = arith.constant 0 : index
      %179 = vector.load %arg13[%c0_120, %c0_121] : memref<8x32xbf16, #tpu.memory_space<vmem>>, vector<8x8xbf16>
      tpu.vector_store %arg13[%c0_120, %c0_121], %178 {strides = array<i32>} : memref<8x32xbf16, #tpu.memory_space<vmem>>, vector<8x8xbf16>,
      %c1_122 = arith.constant 1 : index
      %c0_123 = arith.constant 0 : index
      %c0_124 = arith.constant 0 : index
      %180 = vector.load %arg16[%c1_122, %c0_123, %c0_124] : memref<4x8x8xf32, #tpu.memory_space<vmem>>, vector<1x8x8xf32>
      %181 = vector.shape_cast %180 : vector<1x8x8xf32> to vector<8x8xf32>
      %c1_125 = arith.constant 1 : index
      %c0_126 = arith.constant 0 : index
      %c0_127 = arith.constant 0 : index
      %182 = vector.load %arg15[%c1_125, %c0_126, %c0_127] : memref<4x8x1xf32, #tpu.memory_space<vmem>>, vector<1x8x1xf32>
      %183 = vector.shape_cast %182 : vector<1x8x1xf32> to vector<8x1xf32>
      %184 = tpu.reciprocal %183 {approx = true} : vector<8x1xf32> -> vector<8x1xf32>
      %185 = vector.broadcast %184 : vector<8x1xf32> to vector<8x8xf32>
      %186 = arith.mulf %181, %185 : vector<8x8xf32>
      %187 = arith.truncf %186 : vector<8x8xf32> to vector<8x8xbf16>
      %c0_128 = arith.constant 0 : index
      %c8_129 = arith.constant 8 : index
      %188 = vector.load %arg13[%c0_128, %c8_129] : memref<8x32xbf16, #tpu.memory_space<vmem>>, vector<8x8xbf16>
      tpu.vector_store %arg13[%c0_128, %c8_129], %187 {strides = array<i32>} : memref<8x32xbf16, #tpu.memory_space<vmem>>, vector<8x8xbf16>,
      %c2_130 = arith.constant 2 : index
      %c0_131 = arith.constant 0 : index
      %c0_132 = arith.constant 0 : index
      %189 = vector.load %arg16[%c2_130, %c0_131, %c0_132] : memref<4x8x8xf32, #tpu.memory_space<vmem>>, vector<1x8x8xf32>
      %190 = vector.shape_cast %189 : vector<1x8x8xf32> to vector<8x8xf32>
      %c2_133 = arith.constant 2 : index
      %c0_134 = arith.constant 0 : index
      %c0_135 = arith.constant 0 : index
      %191 = vector.load %arg15[%c2_133, %c0_134, %c0_135] : memref<4x8x1xf32, #tpu.memory_space<vmem>>, vector<1x8x1xf32>
      %192 = vector.shape_cast %191 : vector<1x8x1xf32> to vector<8x1xf32>
      %193 = tpu.reciprocal %192 {approx = true} : vector<8x1xf32> -> vector<8x1xf32>
      %194 = vector.broadcast %193 : vector<8x1xf32> to vector<8x8xf32>
      %195 = arith.mulf %190, %194 : vector<8x8xf32>
      %196 = arith.truncf %195 : vector<8x8xf32> to vector<8x8xbf16>
      %c0_136 = arith.constant 0 : index
      %c16_137 = arith.constant 16 : index
      %197 = vector.load %arg13[%c0_136, %c16_137] : memref<8x32xbf16, #tpu.memory_space<vmem>>, vector<8x8xbf16>
      tpu.vector_store %arg13[%c0_136, %c16_137], %196 {strides = array<i32>} : memref<8x32xbf16, #tpu.memory_space<vmem>>, vector<8x8xbf16>,
      %c3_138 = arith.constant 3 : index
      %c0_139 = arith.constant 0 : index
      %c0_140 = arith.constant 0 : index
      %198 = vector.load %arg16[%c3_138, %c0_139, %c0_140] : memref<4x8x8xf32, #tpu.memory_space<vmem>>, vector<1x8x8xf32>
      %199 = vector.shape_cast %198 : vector<1x8x8xf32> to vector<8x8xf32>
      %c3_141 = arith.constant 3 : index
      %c0_142 = arith.constant 0 : index
      %c0_143 = arith.constant 0 : index
      %200 = vector.load %arg15[%c3_141, %c0_142, %c0_143] : memref<4x8x1xf32, #tpu.memory_space<vmem>>, vector<1x8x1xf32>
      %201 = vector.shape_cast %200 : vector<1x8x1xf32> to vector<8x1xf32>
      %202 = tpu.reciprocal %201 {approx = true} : vector<8x1xf32> -> vector<8x1xf32>
      %203 = vector.broadcast %202 : vector<8x1xf32> to vector<8x8xf32>
      %204 = arith.mulf %199, %203 : vector<8x8xf32>
      %205 = arith.truncf %204 : vector<8x8xf32> to vector<8x8xbf16>
      %c0_144 = arith.constant 0 : index
      %c24_145 = arith.constant 24 : index
      %206 = vector.load %arg13[%c0_144, %c24_145] : memref<8x32xbf16, #tpu.memory_space<vmem>>, vector<8x8xbf16>
      tpu.vector_store %arg13[%c0_144, %c24_145], %205 {strides = array<i32>} : memref<8x32xbf16, #tpu.memory_space<vmem>>, vector<8x8xbf16>,
      %c0_146 = arith.constant 0 : index
      %c0_147 = arith.constant 0 : index
      %207 = vector.load %arg13[%c0_146, %c0_147] : memref<8x32xbf16, #tpu.memory_space<vmem>>, vector<8x32xbf16>
      %c0_148 = arith.constant 0 : index
      %c0_149 = arith.constant 0 : index
      %208 = vector.load %arg8[%c0_148, %c0_149] : memref<32x32xbf16, #tpu.memory_space<vmem>>, vector<32x32xbf16>
      %cst_150 = arith.constant dense<0.000000e+00> : vector<8x32xf32>
      %209 = tpu.matmul %207, %208, %cst_150 {dimension_numbers = #tpu.dot_dimension_numbers<[1], [0], [0], [1], [0, 0, 1, 1], [], []>} : vector<8x32xbf16>, vector<32x32xbf16>, vector<8x32xf32> -> vector<8x32xf32>
      %c0_151 = arith.constant 0 : index
      %c0_152 = arith.constant 0 : index
      %210 = vector.load %arg9[%c0_151, %c0_152] : memref<1x32xf32, #tpu.memory_space<vmem>>, vector<1x32xf32>
      %211 = vector.broadcast %210 : vector<1x32xf32> to vector<8x32xf32>
      %212 = arith.addf %209, %211 : vector<8x32xf32>
      %c0_153 = arith.constant 0 : index
      %c0_154 = arith.constant 0 : index
      %c0_155 = arith.constant 0 : index
      %213 = vector.load %arg10[%c0_153, %c0_154, %c0_155] : memref<1x8x32xf32, #tpu.memory_space<vmem>>, vector<1x8x32xf32>
      %214 = vector.shape_cast %213 : vector<1x8x32xf32> to vector<8x32xf32>
      %215 = vector.shape_cast %212 : vector<8x32xf32> to vector<1x8x32xf32>
      tpu.vector_store %arg10[%c0_153, %c0_154, %c0_155], %215 {strides = array<i32>} : memref<1x8x32xf32, #tpu.memory_space<vmem>>, vector<1x8x32xf32>,
    } else {
    }
    return
  }
  func.func @transform_0(%arg0: i32, %arg1: i32, %arg2: i32) -> (i32, i32, i32) {
    %c0_i32 = arith.constant 0 : i32
    %c0_i32_0 = arith.constant 0 : i32
    return %arg0, %arg1, %c0_i32 : i32, i32, i32
  }
  func.func @transform_1(%arg0: i32, %arg1: i32, %arg2: i32) -> (i32, i32, i32) {
    %c0_i32 = arith.constant 0 : i32
    %c0_i32_0 = arith.constant 0 : i32
    return %arg0, %arg2, %c0_i32 : i32, i32, i32
  }
  func.func @transform_2(%arg0: i32, %arg1: i32, %arg2: i32) -> (i32, i32, i32) {
    %c0_i32 = arith.constant 0 : i32
    %c0_i32_0 = arith.constant 0 : i32
    return %arg0, %c0_i32, %arg2 : i32, i32, i32
  }
  func.func @transform_3(%arg0: i32, %arg1: i32, %arg2: i32) -> (i32, i32) {
    %c0_i32 = arith.constant 0 : i32
    %c0_i32_0 = arith.constant 0 : i32
    %c0_i32_1 = arith.constant 0 : i32
    return %c0_i32, %c0_i32_0 : i32, i32
  }
  func.func @transform_4(%arg0: i32, %arg1: i32, %arg2: i32) -> (i32, i32) {
    %c0_i32 = arith.constant 0 : i32
    %c0_i32_0 = arith.constant 0 : i32
    %c0_i32_1 = arith.constant 0 : i32
    return %c0_i32, %c0_i32_0 : i32, i32
  }
  func.func @transform_5(%arg0: i32, %arg1: i32, %arg2: i32) -> (i32, i32) {
    %c0_i32 = arith.constant 0 : i32
    %c0_i32_0 = arith.constant 0 : i32
    %c0_i32_1 = arith.constant 0 : i32
    return %c0_i32, %c0_i32_0 : i32, i32
  }
  func.func @transform_6(%arg0: i32, %arg1: i32, %arg2: i32) -> (i32, i32) {
    %c0_i32 = arith.constant 0 : i32
    %c0_i32_0 = arith.constant 0 : i32
    %c0_i32_1 = arith.constant 0 : i32
    return %c0_i32, %c0_i32_0 : i32, i32
  }
  func.func @transform_7(%arg0: i32, %arg1: i32, %arg2: i32) -> (i32, i32, i32) {
    %c0_i32 = arith.constant 0 : i32
    %c0_i32_0 = arith.constant 0 : i32
    return %arg0, %arg1, %c0_i32 : i32, i32, i32
  }
}

</mosaic_0001>

<llo_original>
// kernel: tpu_custom_call.1
$region0: #{tpu_custom_call.1}
  #allocation0 [shape = 'u32[]', space=smem, size = 0x4, offset = 0x4, fixed_abs, tag = 'smem constant byte address 0x4 - core index']
  #allocation1 [shape = 'u32[72,128]{1,0:T(1,128)}', space=vmem, size = 0x9000, scoped, tag = 'internal scratch']
  #allocation2 [shape = 'bf16[8,32]{1,0:T(8,128)(2,1)}', space=vmem, size = 0x800, scoped, tag = 'scratch operand']
  #allocation3 [shape = 'bf16[16,64]{1,0:T(8,128)(2,1)}', space=vmem, size = 0x1000, scoped, tag = 'scratch operand']
  #allocation4 [shape = 'bf16[8,32]{1,0:T(8,128)(2,1)}', space=vmem, size = 0x800, scoped, tag = 'scratch operand']
  #allocation5 [shape = 'f32[4,8,1]{2,1,0:T(8,128)}', space=vmem, size = 0x4000, scoped, tag = 'scratch operand']
  #allocation6 [shape = 'f32[4,8,1]{2,1,0:T(8,128)}', space=vmem, size = 0x4000, scoped, tag = 'scratch operand']
  #allocation7 [shape = 'f32[4,8,8]{2,1,0:T(8,128)}', space=vmem, size = 0x4000, scoped, tag = 'scratch operand']
  %s0 = inlined_call_operand.hbm [shape: f32[2,8,32], index: 0, kind: input, shape index: {}]
  %s1 = inlined_call_operand.hbm [shape: f32[2,16,16], index: 1, kind: input, shape index: {}]
  %s2 = inlined_call_operand.hbm [shape: f32[2,1,16], index: 2, kind: input, shape index: {}]
  %s3 = inlined_call_operand.hbm [shape: bf16[32,32], index: 3, kind: input, shape index: {}]
  %s4 = inlined_call_operand.hbm [shape: bf16[16,64], index: 4, kind: input, shape index: {}]
  %s5 = inlined_call_operand.hbm [shape: bf16[32,32], index: 5, kind: input, shape index: {}]
  %s6 = inlined_call_operand.vmem [shape: f32[1,32], index: 6, kind: input, shape index: {}]
  %s7 = inlined_call_operand.hbm [shape: f32[2,8,32], index: 7, kind: output, shape index: {}]
  %s8 = sld [smem:[#allocation0]]
  $region93: #{tpu_custom_call.1} parent=0
    _
  %s10 = ssub.s32 1, %s8
  %s11 = scalar_select 0, %s10, %s8
  $region1: #{tpu_custom_call.1} parent=0
    #allocation8 [shape = 'u8[8192]{0}', space=vmem, size = 0x2000, scoped, tag = 'input window, operand 0']
    #allocation9 [shape = 's32[2]{0}', space=sflag, size = 0x8, scoped, tag = 'scoped memory for tpu_custom_call.1']
    #allocation10 [shape = 's32[2]{0}', space=sflag, size = 0x8, scoped, tag = 'scoped memory for tpu_custom_call.1']
    #allocation11 [shape = 'u8[16384]{0}', space=vmem, size = 0x4000, scoped, tag = 'input window, operand 1']
    #allocation12 [shape = 's32[2]{0}', space=sflag, size = 0x8, scoped, tag = 'scoped memory for tpu_custom_call.1']
    #allocation13 [shape = 'u8[1024]{0}', space=vmem, size = 0x400, scoped, tag = 'input window, operand 2']
    #allocation14 [shape = 'u8[8192]{0}', space=vmem, size = 0x2000, scoped, tag = 'input window, operand 3, single buffered']
    #allocation15 [shape = 's32[1]{0}', space=sflag, size = 0x4, scoped, tag = 'scoped memory for tpu_custom_call.1']
    #allocation16 [shape = 'u8[4096]{0}', space=vmem, size = 0x1000, scoped, tag = 'input window, operand 4, single buffered']
    #allocation17 [shape = 'u8[8192]{0}', space=vmem, size = 0x2000, scoped, tag = 'input window, operand 5, single buffered']
    #allocation18 [shape = 's32[1]{0}', space=sflag, size = 0x4, scoped, tag = 'scoped memory for tpu_custom_call.1']
    #allocation19 [shape = 'u8[8192]{0}', space=vmem, size = 0x2000, scoped, tag = 'output window, operand 0']
    %12 = vsyncpa [#allocation9], 0
    %s13 = scalar_lea.sflag [#allocation9], 1
    %14 = vsyncpa %s13, 0
    %15 = vsyncpa [#allocation12], 0
    %s16 = scalar_lea.sflag [#allocation12], 1
    %17 = vsyncpa %s16, 0
    %18 = vsyncpa [#allocation15], 0
    %19 = vsyncpa [#allocation18], 0
    %20 = vsyncpa [#allocation10], 0
    %s21 = scalar_lea.sflag [#allocation10], 1
    %22 = vsyncpa %s21, 0
    loop: start=0, step=1, limit=4
    $region2: #{tpu_custom_call.1} parent=1 // loop_pre_header
      _
    $region3: #{tpu_custom_call.1} parent=1 // loop_header
      %s24 = sphi 0, %s28
      %p25 = scmp.ge.s32.totalorder %s24, 4
      %s31 = sphi 0, %s50
      %s32 = sphi 0, %s46
      %s33 = sphi 0, %s42
      %s34 = sphi 0, %s31
      %s35 = sphi 0, %s32
      %s36 = sphi 0, %s33
      %s37 = sphi 0, %s34
      %s38 = sphi 0, %s35
      %s39 = sphi 0, %s36
      %s55 = sphi 0, %s57
      %s58 = sphi 0, %s55
      %s59 = sphi 0, %s58
      %s75 = sphi 0, %s59
      %s83 = sphi 0, %s85
      %s86 = sphi 0, %s83
      %s87 = sphi 0, %s86
      %s103 = sphi 0, %s87
      %s111 = sphi 0, %s113
      %s114 = sphi 0, %s111
      %s115 = sphi 0, %s114
      %s131 = sphi 0, %s115
      %s135 = sphi 0, %s135
      %s137 = sphi 0, %s135
      %s138 = sphi 0, %s137
      %s152 = sphi 0, %s138
      %s156 = sphi 0, %s156
      %s158 = sphi 0, %s156
      %s159 = sphi 0, %s158
      %s173 = sphi 0, %s159
      %s177 = sphi 0, %s177
      %s179 = sphi 0, %s177
      %s180 = sphi 0, %s179
      %s194 = sphi 0, %s180
      %s198 = sphi 0, %s198
      %s200 = sphi 0, %s198
      %s201 = sphi 0, %s200
      %s215 = sphi 0, %s201
      %s223 = sphi 0, %s225
      %s226 = sphi 0, %s223
      %s227 = sphi 0, %s226
      %s243 = sphi 0, %s227
    $region4: #{tpu_custom_call.1} parent=1 // loop_header_branch
      %27 = sbr.rel (%p25) target = $region8
    $region5: #{tpu_custom_call.1} parent=1 // loop_body
      %s29 = ssub.s32 %s24, 1
      %s30 = ssub.s32 %s24, 2
      %s40 = sadd.s32 1, %s33
      %p41 = scmp.ge.s32.totalorder %s40, 1
      %s42 = scalar_select %p41, 0, %s40
      %s43 = sadd.s32 1, %s32
      %s44 = scalar_select %p41, %s43, %s32
      %p45 = scmp.ge.s32.totalorder %s44, 1
      %s46 = scalar_select %p45, 0, %s44
      %s47 = sadd.s32 1, %s31
      %s48 = scalar_select %p45, %s47, %s31
      %p49 = scmp.ge.s32.totalorder %s48, 2
      %s50 = scalar_select %p49, 0, %s48
      %s51 = ssub.s32 %s31, %s50
      %s52 = ssub.s32 %s32, %s46
      %s53 = sor.u32 %s51, %s52
      %p54 = scmp.eq.s32.totalorder %s53, 0
      %s56 = sadd.s32 %s55, 1
      %s57 = scalar_select %p54, %s55, %s56
      %p60 = pneg %p54
      %p61 = scmp.eq.s32.totalorder %s24, 1
      %p62 = por %p60, %p61
      %p63 = scmp.ne.s32.totalorder %s55, %s58
      %p64 = scmp.eq.s32.totalorder %s24, 0
      %p65 = por %p63, %p64
      %p66 = scmp.ne.s32.totalorder %s55, %s58
      %p67 = scmp.eq.s32.totalorder %s29, 1
      %p68 = por %p66, %p67
      %p69 = scmp.ne.s32.totalorder %s58, %s59
      %p70 = scmp.eq.s32.totalorder %s29, 0
      %p71 = por %p69, %p70
      %p72 = scmp.ne.s32.totalorder %s58, %s59
      %p73 = scmp.eq.s32.totalorder %s30, 1
      %p74 = por %p72, %p73
      %p76 = scmp.ne.s32.totalorder %s59, %s75
      %p77 = scmp.eq.s32.totalorder %s30, 0
      %p78 = por %p76, %p77
      %s79 = ssub.s32 %s31, %s50
      %s80 = ssub.s32 %s33, %s42
      %s81 = sor.u32 %s79, %s80
      %p82 = scmp.eq.s32.totalorder %s81, 0
      %s84 = sadd.s32 %s83, 1
      %s85 = scalar_select %p82, %s83, %s84
      %p88 = pneg %p82
      %p89 = scmp.eq.s32.totalorder %s24, 1
      %p90 = por %p88, %p89
      %p91 = scmp.ne.s32.totalorder %s83, %s86
      %p92 = scmp.eq.s32.totalorder %s24, 0
      %p93 = por %p91, %p92
      %p94 = scmp.ne.s32.totalorder %s83, %s86
      %p95 = scmp.eq.s32.totalorder %s29, 1
      %p96 = por %p94, %p95
      %p97 = scmp.ne.s32.totalorder %s86, %s87
      %p98 = scmp.eq.s32.totalorder %s29, 0
      %p99 = por %p97, %p98
      %p100 = scmp.ne.s32.totalorder %s86, %s87
      %p101 = scmp.eq.s32.totalorder %s30, 1
      %p102 = por %p100, %p101
      %p104 = scmp.ne.s32.totalorder %s87, %s103
      %p105 = scmp.eq.s32.totalorder %s30, 0
      %p106 = por %p104, %p105
      %s107 = ssub.s32 %s31, %s50
      %s108 = ssub.s32 %s33, %s42
      %s109 = sor.u32 %s107, %s108
      %p110 = scmp.eq.s32.totalorder %s109, 0
      %s112 = sadd.s32 %s111, 1
      %s113 = scalar_select %p110, %s111, %s112
      %p116 = pneg %p110
      %p117 = scmp.eq.s32.totalorder %s24, 1
      %p118 = por %p116, %p117
      %p119 = scmp.ne.s32.totalorder %s111, %s114
      %p120 = scmp.eq.s32.totalorder %s24, 0
      %p121 = por %p119, %p120
      %p122 = scmp.ne.s32.totalorder %s111, %s114
      %p123 = scmp.eq.s32.totalorder %s29, 1
      %p124 = por %p122, %p123
      %p125 = scmp.ne.s32.totalorder %s114, %s115
      %p126 = scmp.eq.s32.totalorder %s29, 0
      %p127 = por %p125, %p126
      %p128 = scmp.ne.s32.totalorder %s114, %s115
      %p129 = scmp.eq.s32.totalorder %s30, 1
      %p130 = por %p128, %p129
      %p132 = scmp.ne.s32.totalorder %s115, %s131
      %p133 = scmp.eq.s32.totalorder %s30, 0
      %p134 = por %p132, %p133
      %s136 = sadd.s32 %s135, 1
      %p139 = scmp.eq.s32.totalorder %s24, 1
      %p140 = scmp.ne.s32.totalorder %s135, %s137
      %p141 = scmp.eq.s32.totalorder %s24, 0
      %p142 = por %p140, %p141
      %p143 = scmp.ne.s32.totalorder %s135, %s137
      %p144 = scmp.eq.s32.totalorder %s29, 1
      %p145 = por %p143, %p144
      %p146 = scmp.ne.s32.totalorder %s137, %s138
      %p147 = scmp.eq.s32.totalorder %s29, 0
      %p148 = por %p146, %p147
      %p149 = scmp.ne.s32.totalorder %s137, %s138
      %p150 = scmp.eq.s32.totalorder %s30, 1
      %p151 = por %p149, %p150
      %p153 = scmp.ne.s32.totalorder %s138, %s152
      %p154 = scmp.eq.s32.totalorder %s30, 0
      %p155 = por %p153, %p154
      %s157 = sadd.s32 %s156, 1
      %p160 = scmp.eq.s32.totalorder %s24, 1
      %p161 = scmp.ne.s32.totalorder %s156, %s158
      %p162 = scmp.eq.s32.totalorder %s24, 0
      %p163 = por %p161, %p162
      %p164 = scmp.ne.s32.totalorder %s156, %s158
      %p165 = scmp.eq.s32.totalorder %s29, 1
      %p166 = por %p164, %p165
      %p167 = scmp.ne.s32.totalorder %s158, %s159
      %p168 = scmp.eq.s32.totalorder %s29, 0
      %p169 = por %p167, %p168
      %p170 = scmp.ne.s32.totalorder %s158, %s159
      %p171 = scmp.eq.s32.totalorder %s30, 1
      %p172 = por %p170, %p171
      %p174 = scmp.ne.s32.totalorder %s159, %s173
      %p175 = scmp.eq.s32.totalorder %s30, 0
      %p176 = por %p174, %p175
      %s178 = sadd.s32 %s177, 1
      %p181 = scmp.eq.s32.totalorder %s24, 1
      %p182 = scmp.ne.s32.totalorder %s177, %s179
      %p183 = scmp.eq.s32.totalorder %s24, 0
      %p184 = por %p182, %p183
      %p185 = scmp.ne.s32.totalorder %s177, %s179
      %p186 = scmp.eq.s32.totalorder %s29, 1
      %p187 = por %p185, %p186
      %p188 = scmp.ne.s32.totalorder %s179, %s180
      %p189 = scmp.eq.s32.totalorder %s29, 0
      %p190 = por %p188, %p189
      %p191 = scmp.ne.s32.totalorder %s179, %s180
      %p192 = scmp.eq.s32.totalorder %s30, 1
      %p193 = por %p191, %p192
      %p195 = scmp.ne.s32.totalorder %s180, %s194
      %p196 = scmp.eq.s32.totalorder %s30, 0
      %p197 = por %p195, %p196
      %s199 = sadd.s32 %s198, 1
      %p202 = scmp.eq.s32.totalorder %s24, 1
      %p203 = scmp.ne.s32.totalorder %s198, %s200
      %p204 = scmp.eq.s32.totalorder %s24, 0
      %p205 = por %p203, %p204
      %p206 = scmp.ne.s32.totalorder %s198, %s200
      %p207 = scmp.eq.s32.totalorder %s29, 1
      %p208 = por %p206, %p207
      %p209 = scmp.ne.s32.totalorder %s200, %s201
      %p210 = scmp.eq.s32.totalorder %s29, 0
      %p211 = por %p209, %p210
      %p212 = scmp.ne.s32.totalorder %s200, %s201
      %p213 = scmp.eq.s32.totalorder %s30, 1
      %p214 = por %p212, %p213
      %p216 = scmp.ne.s32.totalorder %s201, %s215
      %p217 = scmp.eq.s32.totalorder %s30, 0
      %p218 = por %p216, %p217
      %s219 = ssub.s32 %s31, %s50
      %s220 = ssub.s32 %s32, %s46
      %s221 = sor.u32 %s219, %s220
      %p222 = scmp.eq.s32.totalorder %s221, 0
      %s224 = sadd.s32 %s223, 1
      %s225 = scalar_select %p222, %s223, %s224
      %p228 = pneg %p222
      %p229 = scmp.eq.s32.totalorder %s24, 1
      %p230 = por %p228, %p229
      %p231 = scmp.ne.s32.totalorder %s223, %s226
      %p232 = scmp.eq.s32.totalorder %s24, 0
      %p233 = por %p231, %p232
      %p234 = scmp.ne.s32.totalorder %s223, %s226
      %p235 = scmp.eq.s32.totalorder %s29, 1
      %p236 = por %p234, %p235
      %p237 = scmp.ne.s32.totalorder %s226, %s227
      %p238 = scmp.eq.s32.totalorder %s29, 0
      %p239 = por %p237, %p238
      %p240 = scmp.ne.s32.totalorder %s226, %s227
      %p241 = scmp.eq.s32.totalorder %s30, 1
      %p242 = por %p240, %p241
      %p244 = scmp.ne.s32.totalorder %s227, %s243
      %p245 = scmp.eq.s32.totalorder %s30, 0
      %p246 = por %p244, %p245
      %p247 = scmp.le.s32.totalorder 1, %s24
      %p248 = scmp.lt.s32.totalorder %s24, 3
      %p249 = pnand %p247, %p248
      %p250 = pneg %p249
      // Predicated region
      $region9: #{tpu_custom_call.1} parent=5 // pred_check
        _
      $region10: #{tpu_custom_call.1} parent=5 // pred_check_branch
        %252 = sbr.rel (%p249) target = $region12
      $region11: #{tpu_custom_call.1} parent=5 // pred_region
        %s253 = ssub.s32 %s24, 1
        // Predicated region
        $region13: #{tpu_custom_call.1} parent=11 // pred_check
          %p254 = pneg %p148
        $region14: #{tpu_custom_call.1} parent=11 // pred_check_branch
          %256 = sbr.rel (%p254) target = $region16
        $region15: #{tpu_custom_call.1} parent=11 // pred_region
          %258 = vsyncadd [#allocation15], 0
          %s259 = sshll.u32 %s3, 4
          %s260 = int_to_ptr.hbm [resolvable:$true] %s259
          %s261 = sshll.u32 [#allocation14], 4
          %s262 = int_to_ptr.vmem [resolvable:$true] %s261
          %267 = dma.hbm_to_vmem [thread:$0]  %s260, 256, %s262, [#allocation15], 64, 64, 4
        $region16: #{tpu_custom_call.1} parent=11 // pred_fallthru
          _
        // Predicated region
        $region17: #{tpu_custom_call.1} parent=11 // pred_check
          %p268 = pneg %p169
        $region18: #{tpu_custom_call.1} parent=11 // pred_check_branch
          %270 = sbr.rel (%p268) target = $region20
        $region19: #{tpu_custom_call.1} parent=11 // pred_region
          %272 = vsyncadd [#allocation15], 0
          %s273 = sshll.u32 %s4, 4
          %s274 = int_to_ptr.hbm [resolvable:$true] %s273
          %s275 = sshll.u32 [#allocation16], 4
          %s276 = int_to_ptr.vmem [resolvable:$true] %s275
          %281 = dma.hbm_to_vmem [thread:$0]  %s274, 128, %s276, [#allocation15], 64, 64, 4
        $region20: #{tpu_custom_call.1} parent=11 // pred_fallthru
          _
        // Predicated region
        $region21: #{tpu_custom_call.1} parent=11 // pred_check
          %p282 = pneg %p190
        $region22: #{tpu_custom_call.1} parent=11 // pred_check_branch
          %284 = sbr.rel (%p282) target = $region24
        $region23: #{tpu_custom_call.1} parent=11 // pred_region
          %286 = vsyncadd [#allocation18], 0
          %s287 = sshll.u32 %s5, 4
          %s288 = int_to_ptr.hbm [resolvable:$true] %s287
          %s289 = sshll.u32 [#allocation17], 4
          %s290 = int_to_ptr.vmem [resolvable:$true] %s289
          %295 = dma.hbm_to_vmem [thread:$0]  %s288, 256, %s290, [#allocation18], 64, 64, 4
        $region24: #{tpu_custom_call.1} parent=11 // pred_fallthru
          _
        // Predicated region
        $region25: #{tpu_custom_call.1} parent=11 // pred_check
          %p296 = pneg %p211
        $region26: #{tpu_custom_call.1} parent=11 // pred_check_branch
          %298 = sbr.rel (%p296) target = $region28
        $region27: #{tpu_custom_call.1} parent=11 // pred_region
          _
        $region28: #{tpu_custom_call.1} parent=11 // pred_fallthru
          _
      $region12: #{tpu_custom_call.1} parent=5 // pred_fallthru
        _
      %p299 = scmp.lt.s32.totalorder %s24, 2
      // Predicated region
      $region29: #{tpu_custom_call.1} parent=5 // pred_check
        %p300 = pneg %p299
      $region30: #{tpu_custom_call.1} parent=5 // pred_check_branch
        %302 = sbr.rel (%p300) target = $region32
      $region31: #{tpu_custom_call.1} parent=5 // pred_region
        // Predicated region
        $region33: #{tpu_custom_call.1} parent=31 // pred_check
          %p303 = pneg %p65
        $region34: #{tpu_custom_call.1} parent=31 // pred_check_branch
          %305 = sbr.rel (%p303) target = $region36
        $region35: #{tpu_custom_call.1} parent=31 // pred_region
          %s306 = sand.u32 %s55, 1
          %s307 = scalar_lea.sflag [#allocation9], %s306
          %s308 = sand.u32 %s55, 1
          %s309 = smul.addr %s308, 8
          %s310 = scalar_lea.vmem [#allocation8], %s309
          %312 = vsyncadd %s307, 0
          %s313 = sadd.s32 %s32, %s31
          %s314 = smul.addr %s313, 8
          %s315 = scalar_lea.hbm %s0, %s314
          %s317 = sshll.u32 %s315, 4
          %s318 = int_to_ptr.hbm [resolvable:$true] %s317
          %s319 = sshll.u32 %s310, 4
          %s320 = int_to_ptr.vmem [resolvable:$true] %s319
          %322 = dma.hbm_to_vmem [thread:$0]  %s318, 128, %s320, %s307
        $region36: #{tpu_custom_call.1} parent=31 // pred_fallthru
          _
        // Predicated region
        $region37: #{tpu_custom_call.1} parent=31 // pred_check
          %p323 = pneg %p93
        $region38: #{tpu_custom_call.1} parent=31 // pred_check_branch
          %325 = sbr.rel (%p323) target = $region40
        $region39: #{tpu_custom_call.1} parent=31 // pred_region
          %s326 = sand.u32 %s24, 1
          %s327 = scalar_lea.sflag [#allocation12], %s326
          %s328 = sand.u32 %s83, 1
          %s329 = smul.addr %s328, 16
          %s330 = scalar_lea.vmem [#allocation11], %s329
          %s331 = smul.u32 2, %s33
          %333 = vsyncadd %s327, 0
          %s334 = smul.addr %s31, 2
          %s335 = sadd.s32 %s331, %s334
          %s336 = smul.addr %s335, 8
          %s337 = scalar_lea.hbm %s1, %s336
          %s338 = sshll.u32 %s337, 4
          %s339 = int_to_ptr.hbm [resolvable:$true] %s338
          %s340 = sshll.u32 %s330, 4
          %s341 = int_to_ptr.vmem [resolvable:$true] %s340
          %346 = dma.hbm_to_vmem [thread:$0]  %s339, 256, %s341, %s327, 128, 128, 8
        $region40: #{tpu_custom_call.1} parent=31 // pred_fallthru
          _
        // Predicated region
        $region41: #{tpu_custom_call.1} parent=31 // pred_check
          %p347 = pneg %p121
        $region42: #{tpu_custom_call.1} parent=31 // pred_check_branch
          %349 = sbr.rel (%p347) target = $region44
        $region43: #{tpu_custom_call.1} parent=31 // pred_region
          %s350 = sand.u32 %s24, 1
          %s351 = scalar_lea.sflag [#allocation12], %s350
          %s352 = sand.u32 %s111, 1
          %s353 = scalar_lea.vmem [#allocation13], %s352
          %355 = vsyncadd %s351, 0
          %s356 = sadd.s32 %s33, %s31
          %s357 = scalar_lea.hbm %s2, %s356
          %s359 = sshll.u32 %s357, 4
          %s360 = int_to_ptr.hbm [resolvable:$true] %s359
          %s361 = sshll.u32 %s353, 4
          %s362 = int_to_ptr.vmem [resolvable:$true] %s361
          %364 = dma.hbm_to_vmem [thread:$0]  %s360, 16, %s362, %s351
        $region44: #{tpu_custom_call.1} parent=31 // pred_fallthru
          _
      $region32: #{tpu_custom_call.1} parent=5 // pred_fallthru
        _
      %p365 = scmp.le.s32.totalorder 1, %s24
      %p366 = scmp.lt.s32.totalorder %s24, 3
      %p367 = pnand %p365, %p366
      %p368 = pneg %p367
      // Predicated region
      $region45: #{tpu_custom_call.1} parent=5 // pred_check
        _
      $region46: #{tpu_custom_call.1} parent=5 // pred_check_branch
        %370 = sbr.rel (%p367) target = $region48
      $region47: #{tpu_custom_call.1} parent=5 // pred_region
        %s371 = ssub.s32 %s24, 1
        %s372 = sand.u32 %s58, 1
        %s373 = scalar_lea.sflag [#allocation9], %s372
        %s374 = sand.u32 %s58, 1
        %s375 = smul.addr %s374, 8
        %s376 = scalar_lea.vmem [#allocation8], %s375
        // Predicated region
        $region49: #{tpu_custom_call.1} parent=47 // pred_check
          %p377 = pneg %p71
        $region50: #{tpu_custom_call.1} parent=47 // pred_check_branch
          %379 = sbr.rel (%p377) target = $region52
        $region51: #{tpu_custom_call.1} parent=47 // pred_region
          %381 = dma.done %s373, 128
        $region52: #{tpu_custom_call.1} parent=47 // pred_fallthru
          _
        %s382 = sand.u32 %s29, 1
        %s383 = scalar_lea.sflag [#allocation12], %s382
        %s384 = sand.u32 %s86, 1
        %s385 = smul.addr %s384, 16
        %s386 = scalar_lea.vmem [#allocation11], %s385
        // Predicated region
        $region53: #{tpu_custom_call.1} parent=47 // pred_check
          %p387 = pneg %p99
        $region54: #{tpu_custom_call.1} parent=47 // pred_check_branch
          %389 = sbr.rel (%p387) target = $region56
        $region55: #{tpu_custom_call.1} parent=47 // pred_region
          %391 = dma.done %s383, 256
        $region56: #{tpu_custom_call.1} parent=47 // pred_fallthru
          _
        %s392 = sand.u32 %s29, 1
        %s393 = scalar_lea.sflag [#allocation12], %s392
        %s394 = sand.u32 %s114, 1
        %s395 = scalar_lea.vmem [#allocation13], %s394
        // Predicated region
        $region57: #{tpu_custom_call.1} parent=47 // pred_check
          %p396 = pneg %p127
        $region58: #{tpu_custom_call.1} parent=47 // pred_check_branch
          %398 = sbr.rel (%p396) target = $region60
        $region59: #{tpu_custom_call.1} parent=47 // pred_region
          %400 = dma.done %s393, 16
        $region60: #{tpu_custom_call.1} parent=47 // pred_fallthru
          _
        // Predicated region
        $region61: #{tpu_custom_call.1} parent=47 // pred_check
          %p401 = pneg %p148
        $region62: #{tpu_custom_call.1} parent=47 // pred_check_branch
          %403 = sbr.rel (%p401) target = $region64
        $region63: #{tpu_custom_call.1} parent=47 // pred_region
          %405 = dma.done [#allocation15], 256
        $region64: #{tpu_custom_call.1} parent=47 // pred_fallthru
          _
        // Predicated region
        $region65: #{tpu_custom_call.1} parent=47 // pred_check
          %p406 = pneg %p169
        $region66: #{tpu_custom_call.1} parent=47 // pred_check_branch
          %408 = sbr.rel (%p406) target = $region68
        $region67: #{tpu_custom_call.1} parent=47 // pred_region
          %410 = dma.done [#allocation15], 128
        $region68: #{tpu_custom_call.1} parent=47 // pred_fallthru
          _
        // Predicated region
        $region69: #{tpu_custom_call.1} parent=47 // pred_check
          %p411 = pneg %p190
        $region70: #{tpu_custom_call.1} parent=47 // pred_check_branch
          %413 = sbr.rel (%p411) target = $region72
        $region71: #{tpu_custom_call.1} parent=47 // pred_region
          %415 = dma.done [#allocation18], 256
        $region72: #{tpu_custom_call.1} parent=47 // pred_fallthru
          _
        %s416 = sand.u32 %s58, 1
        %s417 = scalar_lea.sflag [#allocation9], %s416
        %s418 = sand.u32 %s58, 1
        %s419 = smul.addr %s418, 8
        %s420 = scalar_lea.vmem [#allocation8], %s419
        %p421 = pneg %p71
        %p422 = pneg %p68
        %s423 = sand.u32 %s29, 1
        %s424 = scalar_lea.sflag [#allocation12], %s423
        %s425 = sand.u32 %s86, 1
        %s426 = smul.addr %s425, 16
        %s427 = scalar_lea.vmem [#allocation11], %s426
        %p428 = pneg %p99
        %p429 = pneg %p96
        %s430 = sand.u32 %s29, 1
        %s431 = scalar_lea.sflag [#allocation12], %s430
        %s432 = sand.u32 %s114, 1
        %s433 = scalar_lea.vmem [#allocation13], %s432
        %p434 = pneg %p127
        %p435 = pneg %p124
        %p436 = pneg %p148
        %p437 = pneg %p145
        %p438 = pneg %p169
        %p439 = pneg %p166
        %p440 = pneg %p190
        %p441 = pneg %p187
        %p442 = pneg %p211
        %p443 = pneg %p208
        %p444 = pneg %p239
        %p445 = pneg %p236
        %s446 = sand.u32 %s226, 1
        %s447 = scalar_lea.sflag [#allocation10], %s446
        %s448 = sand.u32 %s226, 1
        %s449 = smul.addr %s448, 8
        %s450 = scalar_lea.vmem [#allocation19], %s449
        %s451 = smul.u32 2, %s36
        %p453 = scmp.eq.s32.totalorder %s36, 0
        // Predicated region
        $region73: #{tpu_custom_call.1} parent=47 // pred_check
          %p454 = pneg %p453
        $region74: #{tpu_custom_call.1} parent=47 // pred_check_branch
          %456 = sbr.rel (%p454) target = $region76
        $region75: #{tpu_custom_call.1} parent=47 // pred_region
          %v457 = vld [vmem:[%s376] sm:$0xff]
          %v458 = vpack.c.bf16 %v457, %v457
          %v459 = vld [vmem:[#allocation14] sm:$0xf]
          %v460 = vld [vmem:[#allocation14 + $0x4] sm:$0xf]
          %v461 = vld [vmem:[#allocation14 + $0x8] sm:$0xf]
          %v462 = vld [vmem:[#allocation14 + $0xc] sm:$0xf]
          %v467 = vunpack.c.l.b16 %v459
          %v468 = vunpack.c.l.b16 %v460
          %v469 = vunpack.c.l.b16 %v461
          %v470 = vunpack.c.l.b16 %v462
          %v471 = vpack.c.b16 %v468, %v467
          %v472 = vpack.c.b16 %v470, %v469
          %vm475 = vcmask 261120
          %v477 = vsel %vm475, %v458, 0
          %479 = vmatpush.bf16.msra.mxu0 0
          %480 = vmatpush.bf16.msra.mxu0 0
          %481 = vmatpush.bf16.msra.mxu0 0
          %482 = vmatpush.bf16.msra.mxu0 0
          %483 = vmatpush.bf16.msra.mxu0 0
          %484 = vmatpush.bf16.msra.mxu0 0
          %485 = vmatpush.bf16.msra.mxu0 %v472
          %486 = vmatpush.bf16.msra.mxu0 %v471
          %487 = vmatmul.bf16.gmra.mxu0 %v477
          %v488 = vpop.f32.mrf.mxu0
          %v489 = vadd.f32 0.0, %v488
          %v490 = vpop.f32.mrf.mxu0
          %491 = vdwg.mxu0
          %v492 = vpack.c.bf16 %v489, %v489
          %vm493 = vcmask 257024
          %494 = vst.msk [vmem:[#allocation2] sm:$0xf] %vm493, %v492
          %vm495 = vcmask 7168
          %496 = vst.msk [vmem:[#allocation5] sm:$0xff] %vm495, -inf
          %497 = vst.msk [vmem:[#allocation5 + $0x8] sm:$0xff] %vm495, -inf
          %498 = vst.msk [vmem:[#allocation5 + $0x10] sm:$0xff] %vm495, -inf
          %499 = vst.msk [vmem:[#allocation5 + $0x18] sm:$0xff] %vm495, -inf
          %500 = vst.msk [vmem:[#allocation6] sm:$0xff] %vm495, 0.0
          %501 = vst.msk [vmem:[#allocation6 + $0x8] sm:$0xff] %vm495, 0.0
          %502 = vst.msk [vmem:[#allocation6 + $0x10] sm:$0xff] %vm495, 0.0
          %503 = vst.msk [vmem:[#allocation6 + $0x18] sm:$0xff] %vm495, 0.0
          %vm504 = vcmask 64512
          %505 = vst.msk [vmem:[#allocation7] sm:$0xff] %vm504, 0.0
          %506 = vst.msk [vmem:[#allocation7 + $0x8] sm:$0xff] %vm504, 0.0
          %507 = vst.msk [vmem:[#allocation7 + $0x10] sm:$0xff] %vm504, 0.0
          %508 = vst.msk [vmem:[#allocation7 + $0x18] sm:$0xff] %vm504, 0.0
        $region76: #{tpu_custom_call.1} parent=47 // pred_fallthru
          _
        %v509 = vld [vmem:[%s386] sm:$0xff]
        %v510 = vld [vmem:[%s386 + $0x8] sm:$0xff]
        %v511 = vpack.c.bf16 %v510, %v509
        %v512 = vld [vmem:[#allocation16] sm:$0xf]
        %v513 = vld [vmem:[#allocation16 + $0x4] sm:$0xf]
        %v516 = vunpack.c.l.b16 %v512
        %v517 = vunpack.c.l.b16 %v513
        %v518 = vpack.c.b16 %v517, %v516
        %vm520 = vcmask 130048
        %v522 = vsel %vm520, %v511, 0
        %524 = vmatpush.bf16.msra.mxu0 0
        %525 = vmatpush.bf16.msra.mxu0 0
        %526 = vmatpush.bf16.msra.mxu0 0
        %527 = vmatpush.bf16.msra.mxu0 0
        %528 = vmatpush.bf16.msra.mxu0 0
        %529 = vmatpush.bf16.msra.mxu0 0
        %530 = vmatpush.bf16.msra.mxu0 0
        %531 = vmatpush.bf16.msra.mxu0 %v518
        %532 = vmatmul.bf16.gmra.mxu0 %v522
        %v533 = vpop.f32.mrf.mxu0
        %v534 = vadd.f32 0.0, %v533
        %v535 = vpop.f32.mrf.mxu0
        %v536 = vadd.f32 0.0, %v535
        %537 = vdwg.mxu0
        %v538 = vpack.c.bf16 %v534, %v534
        %v539 = vpack.c.bf16 %v536, %v536
        %vm540 = vcmask 519168
        %541 = vst.msk [vmem:[#allocation3] sm:$0xf] %vm540, %v538
        %542 = vst.msk [vmem:[#allocation3 + $0x4] sm:$0xf] %vm540, %v539
        %v543 = vld [vmem:[%s395] sm:$0x1]
        %v544 = vld [vmem:[#allocation2] sm:$0xf]
        %v545 = vld [vmem:[#allocation3] sm:$0xf]
        %v546 = vld [vmem:[#allocation3 + $0x4] sm:$0xf]
        %v548 = vperm.slane %v543, 0
        %v552 = vunpack.c.l.b16 %v545
        %v553 = vunpack.c.l.b16 %v546
        %v554 = vpack.c.b16 %v553, %v552
        %vm555 = vcmask 64512
        %v557 = vsel %vm555, %v544, 0
        %v560 = vsel %vm555, %v554, 0
        %562 = vmatpush.bf16.xpose.msra.mxu0 0
        %563 = vmatpush.bf16.xpose.msra.mxu0 0
        %564 = vmatpush.bf16.xpose.msra.mxu0 0
        %565 = vmatpush.bf16.xpose.msra.mxu0 0
        %566 = vmatpush.bf16.xpose.msra.mxu0 0
        %567 = vmatpush.bf16.xpose.msra.mxu0 0
        %568 = vmatpush.bf16.xpose.msra.mxu0 0
        %569 = vmatpush.bf16.xpose.msra.mxu0 %v560
        %570 = vmatmul.bf16.gmra.mxu0 %v557
        %v571 = vpop.f32.mrf.mxu0
        %v572 = vadd.f32 %v548, %v571
        %v573 = vpop.f32.mrf.mxu0
        %574 = vdwg.mxu0
        %v575 = vld [vmem:[#allocation5] sm:$0xff]
        %v576 = vsel %vm520, %v572, -inf
        %577 = vmax.xlane.f32.xlu0 %v576
        %v578 = vpop.xlane.xlu0 %577
        %v579 = vmax.f32 %v575, %v578
        %v580 = vsub.f32 %v575, %v579
        %v581 = vmul.f32 %v580, 1.442695
        %v582 = vpow.pop %v581
        %584 = vset.pattern.permute.xlu0 0
        %585 = vperm.xlu0 %584, %v579
        %v586 = vpop.permute.xlu0 %585
        %v588 = vsub.f32 %v572, %v586
        %v589 = vpack.c.bf16 %v588, %v588
        %v590 = vunpack.c.l.bf16 %v589
        %v591 = vmul.f32 %v590, 1.442695
        %v592 = vpow.pop %v591
        %v593 = vpack.c.bf16 %v592, %v592
        %v594 = vld [vmem:[#allocation6] sm:$0xff]
        %v595 = vmul.f32 %v582, %v594
        %v596 = vunpack.c.l.bf16 %v593
        %v597 = vsel %vm520, %v596, 0.0
        %598 = vadd.xlane.f32.xlu0 %v597
        %v599 = vpop.xlane.xlu0 %598
        %v600 = vadd.f32 %v595, %v599
        %vm601 = vcmask 7168
        %602 = vst.msk [vmem:[#allocation6] sm:$0xff] %vm601, %v600
        %v603 = vld [vmem:[#allocation7] sm:$0xff]
        %605 = vset.pattern.permute.xlu0 0
        %606 = vperm.xlu0 %605, %v582
        %v607 = vpop.permute.xlu0 %606
        %v609 = vmul.f32 %v607, %v603
        %610 = vrot.lane.b32.xlu0 %v554, 96
        %v611 = vpop.permute.xlu0 %610
        %v614 = vsel %vm520, %v593, 0
        %616 = vmatpush.bf16.msra.mxu0 0
        %617 = vmatpush.bf16.msra.mxu0 0
        %618 = vmatpush.bf16.msra.mxu0 0
        %619 = vmatpush.bf16.msra.mxu0 0
        %620 = vmatpush.bf16.msra.mxu0 0
        %621 = vmatpush.bf16.msra.mxu0 0
        %622 = vmatpush.bf16.msra.mxu0 0
        %623 = vmatpush.bf16.msra.mxu0 %v611
        %624 = vmatmul.bf16.gmra.mxu0 %v614
        %v625 = vpop.f32.mrf.mxu0
        %v626 = vadd.f32 0.0, %v625
        %v627 = vpop.f32.mrf.mxu0
        %628 = vdwg.mxu0
        %v629 = vadd.f32 %v609, %v626
        %630 = vst.msk [vmem:[#allocation7] sm:$0xff] %vm555, %v629
        %631 = vst.msk [vmem:[#allocation5] sm:$0xff] %vm601, %v579
        %v632 = vld [vmem:[#allocation2] sm:$0xf]
        %v633 = vld [vmem:[#allocation3] sm:$0xf]
        %v634 = vld [vmem:[#allocation3 + $0x4] sm:$0xf]
        %v636 = vunpack.c.l.b16 %v632
        %v637 = vpack.c.b16 %v636, %v636
        %638 = vrot.lane.b32.xlu0 %v637, 120
        %v639 = vpop.permute.xlu0 %638
        %v642 = vunpack.c.l.b16 %v633
        %v643 = vunpack.c.l.b16 %v634
        %v644 = vpack.c.b16 %v643, %v642
        %645 = vrot.lane.b32.xlu0 %v644, 120
        %v646 = vpop.permute.xlu0 %645
        %v648 = vsel %vm555, %v639, 0
        %v651 = vsel %vm555, %v646, 0
        %653 = vmatpush.bf16.xpose.msra.mxu0 0
        %654 = vmatpush.bf16.xpose.msra.mxu0 0
        %655 = vmatpush.bf16.xpose.msra.mxu0 0
        %656 = vmatpush.bf16.xpose.msra.mxu0 0
        %657 = vmatpush.bf16.xpose.msra.mxu0 0
        %658 = vmatpush.bf16.xpose.msra.mxu0 0
        %659 = vmatpush.bf16.xpose.msra.mxu0 0
        %660 = vmatpush.bf16.xpose.msra.mxu0 %v651
        %661 = vmatmul.bf16.gmra.mxu0 %v648
        %v662 = vpop.f32.mrf.mxu0
        %v663 = vadd.f32 %v548, %v662
        %v664 = vpop.f32.mrf.mxu0
        %665 = vdwg.mxu0
        %s666 = scalar_lea.vmem [#allocation5], 8
        %v667 = vld [vmem:[%s666] sm:$0xff]
        %v668 = vsel %vm520, %v663, -inf
        %669 = vmax.xlane.f32.xlu0 %v668
        %v670 = vpop.xlane.xlu0 %669
        %v671 = vmax.f32 %v667, %v670
        %v672 = vsub.f32 %v667, %v671
        %v673 = vmul.f32 %v672, 1.442695
        %v674 = vpow.pop %v673
        %676 = vset.pattern.permute.xlu0 0
        %677 = vperm.xlu0 %676, %v671
        %v678 = vpop.permute.xlu0 %677
        %v680 = vsub.f32 %v663, %v678
        %v681 = vpack.c.bf16 %v680, %v680
        %v682 = vunpack.c.l.bf16 %v681
        %v683 = vmul.f32 %v682, 1.442695
        %v684 = vpow.pop %v683
        %v685 = vpack.c.bf16 %v684, %v684
        %s686 = scalar_lea.vmem [#allocation6], 8
        %v687 = vld [vmem:[%s686] sm:$0xff]
        %v688 = vmul.f32 %v674, %v687
        %v689 = vunpack.c.l.bf16 %v685
        %v690 = vsel %vm520, %v689, 0.0
        %691 = vadd.xlane.f32.xlu0 %v690
        %v692 = vpop.xlane.xlu0 %691
        %v693 = vadd.f32 %v688, %v692
        %694 = vst.msk [vmem:[%s686] sm:$0xff] %vm601, %v693
        %s695 = scalar_lea.vmem [#allocation7], 8
        %v696 = vld [vmem:[%s695] sm:$0xff]
        %698 = vset.pattern.permute.xlu0 0
        %699 = vperm.xlu0 %698, %v674
        %v700 = vpop.permute.xlu0 %699
        %v702 = vmul.f32 %v700, %v696
        %703 = vrot.lane.b32.xlu0 %v644, 88
        %v704 = vpop.permute.xlu0 %703
        %v707 = vsel %vm520, %v685, 0
        %709 = vmatpush.bf16.msra.mxu0 0
        %710 = vmatpush.bf16.msra.mxu0 0
        %711 = vmatpush.bf16.msra.mxu0 0
        %712 = vmatpush.bf16.msra.mxu0 0
        %713 = vmatpush.bf16.msra.mxu0 0
        %714 = vmatpush.bf16.msra.mxu0 0
        %715 = vmatpush.bf16.msra.mxu0 0
        %716 = vmatpush.bf16.msra.mxu0 %v704
        %717 = vmatmul.bf16.gmra.mxu0 %v707
        %v718 = vpop.f32.mrf.mxu0
        %v719 = vadd.f32 0.0, %v718
        %v720 = vpop.f32.mrf.mxu0
        %721 = vdwg.mxu0
        %v722 = vadd.f32 %v702, %v719
        %723 = vst.msk [vmem:[%s695] sm:$0xff] %vm555, %v722
        %724 = vst.msk [vmem:[%s666] sm:$0xff] %vm601, %v671
        %v725 = vld [vmem:[#allocation2] sm:$0xf]
        %v726 = vld [vmem:[#allocation3] sm:$0xf]
        %v727 = vld [vmem:[#allocation3 + $0x4] sm:$0xf]
        %v729 = vunpack.c.l.b16 %v725
        %v730 = vpack.c.b16 %v729, %v729
        %731 = vrot.lane.b32.xlu0 %v730, 112
        %v732 = vpop.permute.xlu0 %731
        %v735 = vunpack.c.l.b16 %v726
        %v736 = vunpack.c.l.b16 %v727
        %v737 = vpack.c.b16 %v736, %v735
        %738 = vrot.lane.b32.xlu0 %v737, 112
        %v739 = vpop.permute.xlu0 %738
        %v741 = vsel %vm555, %v732, 0
        %v744 = vsel %vm555, %v739, 0
        %746 = vmatpush.bf16.xpose.msra.mxu0 0
        %747 = vmatpush.bf16.xpose.msra.mxu0 0
        %748 = vmatpush.bf16.xpose.msra.mxu0 0
        %749 = vmatpush.bf16.xpose.msra.mxu0 0
        %750 = vmatpush.bf16.xpose.msra.mxu0 0
        %751 = vmatpush.bf16.xpose.msra.mxu0 0
        %752 = vmatpush.bf16.xpose.msra.mxu0 0
        %753 = vmatpush.bf16.xpose.msra.mxu0 %v744
        %754 = vmatmul.bf16.gmra.mxu0 %v741
        %v755 = vpop.f32.mrf.mxu0
        %v756 = vadd.f32 %v548, %v755
        %v757 = vpop.f32.mrf.mxu0
        %758 = vdwg.mxu0
        %s759 = scalar_lea.vmem [#allocation5], 16
        %v760 = vld [vmem:[%s759] sm:$0xff]
        %v761 = vsel %vm520, %v756, -inf
        %762 = vmax.xlane.f32.xlu0 %v761
        %v763 = vpop.xlane.xlu0 %762
        %v764 = vmax.f32 %v760, %v763
        %v765 = vsub.f32 %v760, %v764
        %v766 = vmul.f32 %v765, 1.442695
        %v767 = vpow.pop %v766
        %769 = vset.pattern.permute.xlu0 0
        %770 = vperm.xlu0 %769, %v764
        %v771 = vpop.permute.xlu0 %770
        %v773 = vsub.f32 %v756, %v771
        %v774 = vpack.c.bf16 %v773, %v773
        %v775 = vunpack.c.l.bf16 %v774
        %v776 = vmul.f32 %v775, 1.442695
        %v777 = vpow.pop %v776
        %v778 = vpack.c.bf16 %v777, %v777
        %s779 = scalar_lea.vmem [#allocation6], 16
        %v780 = vld [vmem:[%s779] sm:$0xff]
        %v781 = vmul.f32 %v767, %v780
        %v782 = vunpack.c.l.bf16 %v778
        %v783 = vsel %vm520, %v782, 0.0
        %784 = vadd.xlane.f32.xlu0 %v783
        %v785 = vpop.xlane.xlu0 %784
        %v786 = vadd.f32 %v781, %v785
        %787 = vst.msk [vmem:[%s779] sm:$0xff] %vm601, %v786
        %s788 = scalar_lea.vmem [#allocation7], 16
        %v789 = vld [vmem:[%s788] sm:$0xff]
        %791 = vset.pattern.permute.xlu0 0
        %792 = vperm.xlu0 %791, %v767
        %v793 = vpop.permute.xlu0 %792
        %v795 = vmul.f32 %v793, %v789
        %796 = vrot.lane.b32.xlu0 %v737, 80
        %v797 = vpop.permute.xlu0 %796
        %v800 = vsel %vm520, %v778, 0
        %802 = vmatpush.bf16.msra.mxu0 0
        %803 = vmatpush.bf16.msra.mxu0 0
        %804 = vmatpush.bf16.msra.mxu0 0
        %805 = vmatpush.bf16.msra.mxu0 0
        %806 = vmatpush.bf16.msra.mxu0 0
        %807 = vmatpush.bf16.msra.mxu0 0
        %808 = vmatpush.bf16.msra.mxu0 0
        %809 = vmatpush.bf16.msra.mxu0 %v797
        %810 = vmatmul.bf16.gmra.mxu0 %v800
        %v811 = vpop.f32.mrf.mxu0
        %v812 = vadd.f32 0.0, %v811
        %v813 = vpop.f32.mrf.mxu0
        %814 = vdwg.mxu0
        %v815 = vadd.f32 %v795, %v812
        %816 = vst.msk [vmem:[%s788] sm:$0xff] %vm555, %v815
        %817 = vst.msk [vmem:[%s759] sm:$0xff] %vm601, %v764
        %v818 = vld [vmem:[#allocation2] sm:$0xf]
        %v819 = vld [vmem:[#allocation3] sm:$0xf]
        %v820 = vld [vmem:[#allocation3 + $0x4] sm:$0xf]
        %v822 = vunpack.c.l.b16 %v818
        %v823 = vpack.c.b16 %v822, %v822
        %824 = vrot.lane.b32.xlu0 %v823, 104
        %v825 = vpop.permute.xlu0 %824
        %v828 = vunpack.c.l.b16 %v819
        %v829 = vunpack.c.l.b16 %v820
        %v830 = vpack.c.b16 %v829, %v828
        %831 = vrot.lane.b32.xlu0 %v830, 104
        %v832 = vpop.permute.xlu0 %831
        %v834 = vsel %vm555, %v825, 0
        %v837 = vsel %vm555, %v832, 0
        %839 = vmatpush.bf16.xpose.msra.mxu0 0
        %840 = vmatpush.bf16.xpose.msra.mxu0 0
        %841 = vmatpush.bf16.xpose.msra.mxu0 0
        %842 = vmatpush.bf16.xpose.msra.mxu0 0
        %843 = vmatpush.bf16.xpose.msra.mxu0 0
        %844 = vmatpush.bf16.xpose.msra.mxu0 0
        %845 = vmatpush.bf16.xpose.msra.mxu0 0
        %846 = vmatpush.bf16.xpose.msra.mxu0 %v837
        %847 = vmatmul.bf16.gmra.mxu0 %v834
        %v848 = vpop.f32.mrf.mxu0
        %v849 = vadd.f32 %v548, %v848
        %v850 = vpop.f32.mrf.mxu0
        %851 = vdwg.mxu0
        %s852 = scalar_lea.vmem [#allocation5], 24
        %v853 = vld [vmem:[%s852] sm:$0xff]
        %v854 = vsel %vm520, %v849, -inf
        %855 = vmax.xlane.f32.xlu0 %v854
        %v856 = vpop.xlane.xlu0 %855
        %v857 = vmax.f32 %v853, %v856
        %v858 = vsub.f32 %v853, %v857
        %v859 = vmul.f32 %v858, 1.442695
        %v860 = vpow.pop %v859
        %862 = vset.pattern.permute.xlu0 0
        %863 = vperm.xlu0 %862, %v857
        %v864 = vpop.permute.xlu0 %863
        %v866 = vsub.f32 %v849, %v864
        %v867 = vpack.c.bf16 %v866, %v866
        %v868 = vunpack.c.l.bf16 %v867
        %v869 = vmul.f32 %v868, 1.442695
        %v870 = vpow.pop %v869
        %v871 = vpack.c.bf16 %v870, %v870
        %s872 = scalar_lea.vmem [#allocation6], 24
        %v873 = vld [vmem:[%s872] sm:$0xff]
        %v874 = vmul.f32 %v860, %v873
        %v875 = vunpack.c.l.bf16 %v871
        %v876 = vsel %vm520, %v875, 0.0
        %877 = vadd.xlane.f32.xlu0 %v876
        %v878 = vpop.xlane.xlu0 %877
        %v879 = vadd.f32 %v874, %v878
        %880 = vst.msk [vmem:[%s872] sm:$0xff] %vm601, %v879
        %s881 = scalar_lea.vmem [#allocation7], 24
        %v882 = vld [vmem:[%s881] sm:$0xff]
        %884 = vset.pattern.permute.xlu0 0
        %885 = vperm.xlu0 %884, %v860
        %v886 = vpop.permute.xlu0 %885
        %v888 = vmul.f32 %v886, %v882
        %889 = vrot.lane.b32.xlu0 %v830, 72
        %v890 = vpop.permute.xlu0 %889
        %v893 = vsel %vm520, %v871, 0
        %895 = vmatpush.bf16.msra.mxu0 0
        %896 = vmatpush.bf16.msra.mxu0 0
        %897 = vmatpush.bf16.msra.mxu0 0
        %898 = vmatpush.bf16.msra.mxu0 0
        %899 = vmatpush.bf16.msra.mxu0 0
        %900 = vmatpush.bf16.msra.mxu0 0
        %901 = vmatpush.bf16.msra.mxu0 0
        %902 = vmatpush.bf16.msra.mxu0 %v890
        %903 = vmatmul.bf16.gmra.mxu0 %v893
        %v904 = vpop.f32.mrf.mxu0
        %v905 = vadd.f32 0.0, %v904
        %v906 = vpop.f32.mrf.mxu0
        %907 = vdwg.mxu0
        %v908 = vadd.f32 %v888, %v905
        %909 = vst.msk [vmem:[%s881] sm:$0xff] %vm555, %v908
        %910 = vst.msk [vmem:[%s852] sm:$0xff] %vm601, %v857
        // Predicated region
        $region77: #{tpu_custom_call.1} parent=47 // pred_check
          %p911 = pneg %p453
        $region78: #{tpu_custom_call.1} parent=47 // pred_check_branch
          %913 = sbr.rel (%p911) target = $region80
        $region79: #{tpu_custom_call.1} parent=47 // pred_region
          %v914 = vld [vmem:[#allocation7] sm:$0xff]
          %v915 = vld [vmem:[#allocation6] sm:$0xff]
          %v916 = vrcp.pop %v915
          %918 = vset.pattern.permute.xlu0 0
          %919 = vperm.xlu0 %918, %v916
          %v920 = vpop.permute.xlu0 %919
          %v922 = vmul.f32 %v914, %v920
          %v923 = vpack.c.bf16 %v922, %v922
          %vm924 = vcmask 60416
          %925 = vst.msk [vmem:[#allocation4] sm:$0xf] %vm924, %v923
          %v926 = vld [vmem:[%s695] sm:$0xff]
          %v927 = vld [vmem:[%s686] sm:$0xff]
          %v928 = vrcp.pop %v927
          %930 = vset.pattern.permute.xlu0 0
          %931 = vperm.xlu0 %930, %v928
          %v932 = vpop.permute.xlu0 %931
          %v934 = vmul.f32 %v926, %v932
          %v935 = vpack.c.bf16 %v934, %v934
          %937 = vrot.lane.b32.xlu0 %v935, 8
          %v938 = vpop.permute.xlu0 %937
          %vm940 = vcmask 126016
          %941 = vst.msk [vmem:[#allocation4] sm:$0xf] %vm940, %v938
          %v942 = vld [vmem:[%s788] sm:$0xff]
          %v943 = vld [vmem:[%s779] sm:$0xff]
          %v944 = vrcp.pop %v943
          %946 = vset.pattern.permute.xlu0 0
          %947 = vperm.xlu0 %946, %v944
          %v948 = vpop.permute.xlu0 %947
          %v950 = vmul.f32 %v942, %v948
          %v951 = vpack.c.bf16 %v950, %v950
          %953 = vrot.lane.b32.xlu0 %v951, 16
          %v954 = vpop.permute.xlu0 %953
          %vm956 = vcmask 191616
          %957 = vst.msk [vmem:[#allocation4] sm:$0xf] %vm956, %v954
          %v958 = vld [vmem:[%s881] sm:$0xff]
          %v959 = vld [vmem:[%s872] sm:$0xff]
          %v960 = vrcp.pop %v959
          %962 = vset.pattern.permute.xlu0 0
          %963 = vperm.xlu0 %962, %v960
          %v964 = vpop.permute.xlu0 %963
          %v966 = vmul.f32 %v958, %v964
          %v967 = vpack.c.bf16 %v966, %v966
          %969 = vrot.lane.b32.xlu0 %v967, 24
          %v970 = vpop.permute.xlu0 %969
          %vm972 = vcmask 257216
          %973 = vst.msk [vmem:[#allocation4] sm:$0xf] %vm972, %v970
          %v974 = vld [vmem:[#allocation4] sm:$0xf]
          %v975 = vld [vmem:[#allocation17] sm:$0xf]
          %v976 = vld [vmem:[#allocation17 + $0x4] sm:$0xf]
          %v977 = vld [vmem:[#allocation17 + $0x8] sm:$0xf]
          %v978 = vld [vmem:[#allocation17 + $0xc] sm:$0xf]
          %v979 = vld [vmem:[%s6] sm:$0x1]
          %v981 = vperm.slane %v979, 0
          %v987 = vunpack.c.l.b16 %v975
          %v988 = vunpack.c.l.b16 %v976
          %v989 = vunpack.c.l.b16 %v977
          %v990 = vunpack.c.l.b16 %v978
          %v991 = vpack.c.b16 %v988, %v987
          %v992 = vpack.c.b16 %v990, %v989
          %vm995 = vcmask 261120
          %v997 = vsel %vm995, %v974, 0
          %999 = vmatpush.bf16.msra.mxu0 0
          %1000 = vmatpush.bf16.msra.mxu0 0
          %1001 = vmatpush.bf16.msra.mxu0 0
          %1002 = vmatpush.bf16.msra.mxu0 0
          %1003 = vmatpush.bf16.msra.mxu0 0
          %1004 = vmatpush.bf16.msra.mxu0 0
          %1005 = vmatpush.bf16.msra.mxu0 %v992
          %1006 = vmatpush.bf16.msra.mxu0 %v991
          %1007 = vmatmul.bf16.gmra.mxu0 %v997
          %v1008 = vpop.f32.mrf.mxu0
          %v1009 = vadd.f32 %v981, %v1008
          %v1010 = vpop.f32.mrf.mxu0
          %1011 = vdwg.mxu0
          %1012 = vst.msk [vmem:[%s450] sm:$0xff] %vm995, %v1009
        $region80: #{tpu_custom_call.1} parent=47 // pred_fallthru
          _
        %s1013 = sand.u32 %s226, 1
        %s1014 = scalar_lea.sflag [#allocation10], %s1013
        %s1015 = sand.u32 %s226, 1
        %s1016 = smul.addr %s1015, 8
        %s1017 = scalar_lea.vmem [#allocation19], %s1016
        // Predicated region
        $region81: #{tpu_custom_call.1} parent=47 // pred_check
          %p1018 = pneg %p236
        $region82: #{tpu_custom_call.1} parent=47 // pred_check_branch
          %1020 = sbr.rel (%p1018) target = $region84
        $region83: #{tpu_custom_call.1} parent=47 // pred_region
          %1022 = vsyncadd %s1014, 0
          %s1023 = sadd.s32 %s35, %s34
          %s1024 = smul.addr %s1023, 8
          %s1025 = scalar_lea.hbm %s7, %s1024
          %s1027 = sshll.u32 %s1017, 4
          %s1028 = int_to_ptr.vmem [resolvable:$true] %s1027
          %s1029 = sshll.u32 %s1025, 4
          %s1030 = int_to_ptr.hbm [resolvable:$true] %s1029
          %1032 = dma.vmem_to_hbm [thread:$0]  %s1028, 128, %s1030, %s1014
        $region84: #{tpu_custom_call.1} parent=47 // pred_fallthru
          _
      $region48: #{tpu_custom_call.1} parent=5 // pred_fallthru
        _
      %p1033 = scmp.le.s32.totalorder 2, %s24
      // Predicated region
      $region85: #{tpu_custom_call.1} parent=5 // pred_check
        %p1034 = pneg %p1033
      $region86: #{tpu_custom_call.1} parent=5 // pred_check_branch
        %1036 = sbr.rel (%p1034) target = $region88
      $region87: #{tpu_custom_call.1} parent=5 // pred_region
        %s1037 = ssub.s32 %s24, 2
        // Predicated region
        $region89: #{tpu_custom_call.1} parent=87 // pred_check
          %p1038 = pneg %p242
        $region90: #{tpu_custom_call.1} parent=87 // pred_check_branch
          %1040 = sbr.rel (%p1038) target = $region92
        $region91: #{tpu_custom_call.1} parent=87 // pred_region
          %s1041 = sand.u32 %s227, 1
          %s1042 = scalar_lea.sflag [#allocation10], %s1041
          %s1043 = sand.u32 %s227, 1
          %s1044 = smul.addr %s1043, 8
          %s1045 = scalar_lea.vmem [#allocation19], %s1044
          %1047 = dma.done %s1042, 128
        $region92: #{tpu_custom_call.1} parent=87 // pred_fallthru
          _
      $region88: #{tpu_custom_call.1} parent=5 // pred_fallthru
        _
    $region6: #{tpu_custom_call.1} parent=1 // loop_footer
      %s28 = sadd.s32 1, %s24
    $region7: #{tpu_custom_call.1} parent=1 // loop_footer_branch
      %23 = sbr.rel target = $region3
    $region8: #{tpu_custom_call.1} parent=1 // loop_exit
      _
    %1048 = vsyncpa [#allocation9], 1
    %s1049 = scalar_lea.sflag [#allocation9], 1
    %1050 = vsyncpa %s1049, 1
    %1051 = vsyncpa [#allocation12], 1
    %s1052 = scalar_lea.sflag [#allocation12], 1
    %1053 = vsyncpa %s1052, 1
    %1054 = vsyncpa [#allocation15], 1
    %1055 = vsyncpa [#allocation18], 1
    %1056 = vsyncpa [#allocation10], 1
    %s1057 = scalar_lea.sflag [#allocation10], 1
    %1058 = vsyncpa %s1057, 1

</llo_original>
